<compile_context>
chip_gen: v7x
topology: tpu7x:2x2x1
jax: 0.10.0
libtpu: 0.0.40
codegen_flags: <defaults>
</compile_context>

<pallas_src>
import itertools
from math import ceil, sqrt

import numpy as np
import jax
import jax.numpy as jnp
from jax.experimental import pallas as pl
from jax.experimental.pallas import tpu as pltpu


def _round_up(n, m):
    return ((n + m - 1) // m) * m


# ---------------------------------------------------------------------------
# Pallas kernel: one grid step handles GROUP_SIZE scales.
#   For each scale i in the group:  y_i = ReLU(ReLU(x_i @ W1_i + b1_i) @ W2_i + b2_i)
#   Then (relation sum + masking of padded relations/rows, on the otherwise idle MXU):
#       o = Sel_g @ [y_0; y_1; ...; y_{G-1}]         with Sel_g a 0/1 block-diagonal matrix.
# ---------------------------------------------------------------------------
def fused_relation_kernel(x_ref, w1_ref, b1_ref, w2_ref, b2_ref, sel_ref,
                          o_ref, y_scratch):
    group_size, rb_pad, _ = x_ref.shape
    for i in range(group_size):                       # static unroll: back-to-back MXU pushes
        x = x_ref[i]                                                      # (rb_pad, in_pad) bf16
        h = jnp.dot(x, w1_ref[i], preferred_element_type=jnp.float32)     # MXU, f32 accumulate
        h = jnp.maximum(h + b1_ref[i], 0.0)                               # f32 VPU
        # TODO(synk): nn.Dropout(p=0.5) omitted -- eval-mode semantics (identity).
        y = jnp.dot(h.astype(jnp.bfloat16), w2_ref[i],
                    preferred_element_type=jnp.float32)                   # MXU, bf16 in / f32 acc
        y = jnp.maximum(y + b2_ref[i], 0.0)                               # (rb_pad, nb_pad) f32
        y_scratch[i * rb_pad:(i + 1) * rb_pad, :] = y                     # sublane-aligned store
    # Relation reduction + masking as one f32 MXU matmul; one dense (group*B, 128) store.
    o_ref[...] = jnp.dot(sel_ref[...], y_scratch[...],
                         preferred_element_type=jnp.float32)


def fused_relation_mlp(x_all, w1_all, b1_all, w2_all, b2_all, sel_all):
    """x_all:   (S_pad, rb_pad, in_pad)  bf16   (S_pad = num_groups * group_size)
       w1_all:  (S_pad, in_pad, hid_pad) bf16,  b1_all: (S_pad, 1, hid_pad) f32
       w2_all:  (S_pad, hid_pad, nb_pad) bf16,  b2_all: (S_pad, 1, nb_pad) f32
       sel_all: (num_groups, group_size*B, group_size*rb_pad) f32 (0/1)
       returns  (num_groups * group_size * B, nb_pad) f32."""
    s_pad, rb_pad, in_pad = x_all.shape
    num_groups, gb, gk = sel_all.shape
    group_size = s_pad // num_groups
    hid_pad = w1_all.shape[2]
    nb_pad = w2_all.shape[2]

    flops = int(2 * s_pad * rb_pad * (in_pad * hid_pad + hid_pad * nb_pad)
                + 2 * num_groups * gb * gk * nb_pad)
    bytes_accessed = int(x_all.size * 2 + w1_all.size * 2 + w2_all.size * 2
                         + b1_all.size * 4 + b2_all.size * 4 + sel_all.size * 4
                         + num_groups * gb * nb_pad * 4)

    return pl.pallas_call(
        fused_relation_kernel,
        out_shape=jax.ShapeDtypeStruct((num_groups * gb, nb_pad), jnp.float32),
        grid_spec=pltpu.PrefetchScalarGridSpec(
            num_scalar_prefetch=0,
            grid=(num_groups,),
            in_specs=[
                pl.BlockSpec((group_size, rb_pad, in_pad), lambda g: (g, 0, 0)),
                pl.BlockSpec((group_size, in_pad, hid_pad), lambda g: (g, 0, 0)),
                pl.BlockSpec((group_size, 1, hid_pad), lambda g: (g, 0, 0)),
                pl.BlockSpec((group_size, hid_pad, nb_pad), lambda g: (g, 0, 0)),
                pl.BlockSpec((group_size, 1, nb_pad), lambda g: (g, 0, 0)),
                pl.BlockSpec((pl.Squeezed(), gb, gk), lambda g: (g, 0, 0)),
            ],
            out_specs=pl.BlockSpec((gb, nb_pad), lambda g: (g, 0)),
            scratch_shapes=[pltpu.VMEM((group_size * rb_pad, nb_pad), jnp.float32)],
        ),
        compiler_params=pltpu.CompilerParams(
            # Disjoint output blocks per group -> shards across v7x's two TensorCores;
            # on single-TC v5e/v6e it is just a 2-iteration loop (vs 7 tiny steps before).
            dimension_semantics=("parallel",),
            # TODO(synk): for large B / img_feature_dim, tile the rb_pad row dim and raise
            # vmem_limit_bytes; at these shapes the defaults have ample headroom.
        ),
        cost_estimate=pl.CostEstimate(flops=flops, transcendentals=0,
                                      bytes_accessed=bytes_accessed),
    )(x_all, w1_all, b1_all, w2_all, b2_all, sel_all)


# ---------------------------------------------------------------------------
# Module wrapper (parameter setup / gather / padding glue in plain JAX)
# ---------------------------------------------------------------------------
def _linear_init(key, fan_in, fan_out):
    kw, kb = jax.random.split(key)
    bound = 1.0 / sqrt(fan_in)
    w = jax.random.uniform(kw, (fan_in, fan_out), jnp.float32, -bound, bound)
    b = jax.random.uniform(kb, (1, fan_out), jnp.float32, -bound, bound)
    return w, b


class RelationModuleMultiScalePallas:
    def __init__(self, img_feature_dim, num_bottleneck, num_frames, in_channels, key):
        self.img_feature_dim = img_feature_dim
        self.num_bottleneck = num_bottleneck
        self.num_frames = num_frames
        self.subsample_num = 9
        self.scales = list(range(num_frames, 1, -1))
        self.relations_scales = [
            list(itertools.combinations(range(num_frames), s)) for s in self.scales
        ]
        self.subsample_scales = [
            min(self.subsample_num, len(r)) for r in self.relations_scales
        ]
        self.num_scales = len(self.scales)

        # Group scales into a few balanced grid steps.
        self.num_groups = 2 if self.num_scales >= 2 else 1
        self.group_size = -(-self.num_scales // self.num_groups)     # ceil
        self.s_pad = self.num_groups * self.group_size               # pad with dummy scales

        keys = jax.random.split(key, 2 * self.num_scales + 1)
        # TODO(synk): clip_model.encode_image (CLIP visual backbone) has no clean in-script
        # equivalent; deterministic global-avg-pool + linear projection stand-in is used.
        kenc = keys[-1]
        bound = 1.0 / sqrt(in_channels)
        self.w_enc = jax.random.uniform(
            kenc, (in_channels, img_feature_dim), jnp.float32, -bound, bound)
        self.b_enc = jnp.zeros((img_feature_dim,), jnp.float32)

        hid = num_bottleneck * 2
        self.hid = hid
        self.fc_params = []
        for i, scale in enumerate(self.scales):
            w1, b1 = _linear_init(keys[2 * i], scale * img_feature_dim, hid)
            w2, b2 = _linear_init(keys[2 * i + 1], hid, num_bottleneck)
            self.fc_params.append((w1, b1, w2, b2))

        # ---- fused / padded kernel operands -------------------------------------------------
        self.r_max = max(self.subsample_scales)
        self.in_pad = _round_up(num_frames * img_feature_dim, 128)
        self.hid_pad = _round_up(hid, 128)
        self.nb_pad = _round_up(num_bottleneck, 128)

        # Frame-index table for every sampled relation of every (padded) scale; padded slots
        # point at frame 0 (harmless: their W1 rows are zero / rows excluded by the selection
        # matrix).
        idx_all = np.zeros((self.s_pad, self.r_max, num_frames), dtype=np.int32)
        nrel = np.zeros((self.s_pad,), dtype=np.int32)
        for sid, scale in enumerate(self.scales):
            sel_ids = self._selected_indices(sid)
            nrel[sid] = len(sel_ids)
            for ri, rel in enumerate(sel_ids):
                idx_all[sid, ri, :scale] = self.relations_scales[sid][rel]
        self.idx_all = jnp.asarray(idx_all)
        self.nrel_np = nrel

        # Zero-padded, stacked fusion weights (bf16 matmul operands, f32 biases). Dummy padded
        # scales get all-zero weights AND all-zero selection rows -> contribute exactly nothing.
        w1_l, b1_l, w2_l, b2_l = [], [], [], []
        for sid in range(self.s_pad):
            if sid < self.num_scales:
                w1, b1, w2, b2 = self.fc_params[sid]
            else:
                w1 = jnp.zeros((1, hid), jnp.float32)
                b1 = jnp.zeros((1, hid), jnp.float32)
                w2 = jnp.zeros((hid, num_bottleneck), jnp.float32)
                b2 = jnp.zeros((1, num_bottleneck), jnp.float32)
            w1_l.append(jnp.pad(w1.astype(jnp.bfloat16),
                                ((0, self.in_pad - w1.shape[0]), (0, self.hid_pad - hid))))
            b1_l.append(jnp.pad(b1, ((0, 0), (0, self.hid_pad - hid))))
            w2_l.append(jnp.pad(w2.astype(jnp.bfloat16),
                                ((0, self.hid_pad - w2.shape[0]),
                                 (0, self.nb_pad - num_bottleneck))))
            b2_l.append(jnp.pad(b2, ((0, 0), (0, self.nb_pad - num_bottleneck))))
        self.w1_all = jnp.stack(w1_l)      # (S_pad, in_pad, hid_pad)  bf16
        self.b1_all = jnp.stack(b1_l)      # (S_pad, 1, hid_pad)       f32
        self.w2_all = jnp.stack(w2_l)      # (S_pad, hid_pad, nb_pad)  bf16
        self.b2_all = jnp.stack(b2_l)      # (S_pad, 1, nb_pad)        f32

        self._sel_cache = {}

    # ------------------------------------------------------------------ helpers
    def _encode_images(self, x_flat):
        pooled = jnp.mean(x_flat, axis=(2, 3))            # (B*T, C)
        return pooled @ self.w_enc + self.b_enc           # (B*T, D)

    def _selected_indices(self, scale_id):
        # Deterministic (rand_relation_sample=False) path of the PyTorch module.
        n_total = len(self.relations_scales[scale_id])
        n_sel = self.subsample_scales[scale_id]
        return [int(ceil(i * n_total / n_sel)) for i in range(n_sel)]

    def _selection_matrices(self, batch, rb_pad):
        cache_key = (batch, rb_pad)
        if cache_key not in self._sel_cache:
            sel = np.zeros((self.num_groups, self.group_size * batch,
                            self.group_size * rb_pad), dtype=np.float32)
            for sid in range(self.num_scales):
                gidx, loc = divmod(sid, self.group_size)
                for r in range(int(self.nrel_np[sid])):
                    for b in range(batch):
                        sel[gidx, loc * batch + b, loc * rb_pad + r * batch + b] = 1.0
            self._sel_cache[cache_key] = jnp.asarray(sel)
        return self._sel_cache[cache_key]

    # ------------------------------------------------------------------ forward
    def __call__(self, x):
        B, T, C, H, W = x.shape
        feats = self._encode_images(x.reshape(B * T, C, H, W))
        feats = feats.astype(jnp.float32).reshape(B, T, self.img_feature_dim)

        rb = self.r_max * B
        rb_pad = _round_up(rb, 8)                          # sublane-friendly matmul M dim

        # Single gather over all (scale, relation) frame tuples.
        # TODO(synk): for realistic img_feature_dim, move this gather in-kernel from a
        # VMEM-resident feats tensor to avoid the ~S*R_max x HBM duplication of feats.
        g = feats[:, self.idx_all, :]                      # (B, S_pad, R_max, T, D)
        g = jnp.transpose(g, (1, 2, 0, 3, 4))              # (S_pad, R_max, B, T, D)
        x_all = g.reshape(self.s_pad, rb, self.num_frames * self.img_feature_dim)
        x_all = jnp.pad(x_all, ((0, 0), (0, rb_pad - rb),
                                (0, self.in_pad - x_all.shape[-1])))
        x_all = x_all.astype(jnp.bfloat16)                 # (S_pad, rb_pad, in_pad)

        sel_all = self._selection_matrices(B, rb_pad)

        out = fused_relation_mlp(x_all, self.w1_all, self.b1_all,
                                 self.w2_all, self.b2_all, sel_all)
        out = out.reshape(self.s_pad, B, self.nb_pad)
        act = out[: self.num_scales, :, : self.num_bottleneck]   # drop dummy scales + lane pad
        act_all = jnp.transpose(act, (1, 0, 2))                  # (B, S, nb)
        act_all_list = [act_all[:, i] for i in range(self.num_scales)]
        return act_all, act_all_list

    # pure-JAX reference of the hot path (unpadded math, same bf16 matmul inputs)
    def reference(self, x):
        B, T, C, H, W = x.shape
        feats = self._encode_images(x.reshape(B * T, C, H, W))
        feats = feats.astype(jnp.float32).reshape(B, T, self.img_feature_dim)
        outs = []
        for sid, scale in enumerate(self.scales):
            w1, b1, w2, b2 = self.fc_params[sid]
            w1b = w1.astype(jnp.bfloat16)
            w2b = w2.astype(jnp.bfloat16)
            acc = jnp.zeros((B, self.num_bottleneck), jnp.float32)
            for rel in self._selected_indices(sid):
                frame_ids = jnp.asarray(self.relations_scales[sid][rel], dtype=jnp.int32)
                xr = feats[:, frame_ids, :].reshape(B, scale * self.img_feature_dim)
                xr = xr.astype(jnp.bfloat16)
                h = jnp.maximum(
                    jnp.dot(xr, w1b, preferred_element_type=jnp.float32) + b1, 0.0)
                yv = jnp.maximum(
                    jnp.dot(h.astype(jnp.bfloat16), w2b,
                            preferred_element_type=jnp.float32) + b2, 0.0)
                acc = acc + yv
            outs.append(acc)
        return jnp.stack(outs, axis=1), outs


if __name__ == "__main__":
    # Small, forward-consistent shapes: batch=2, frames=8, channels=4, spatial=16,
    # img_feature_dim=32, num_bottleneck=32.
    B, T, C, H, W = 2, 8, 4, 16, 16
    D, NB = 32, 32

    key = jax.random.PRNGKey(0)
    k_model, k_data = jax.random.split(key)

    module = RelationModuleMultiScalePallas(
        img_feature_dim=D, num_bottleneck=NB, num_frames=T, in_channels=C, key=k_model
    )
    x = jax.random.normal(k_data, (B, T, C, H, W), dtype=jnp.float32)

    act_all, act_all_list = module(x)
    act_all = jax.block_until_ready(act_all)

    ref_all, _ = module.reference(x)
    assert act_all.shape == (B, len(module.scales), NB), act_all.shape
    assert len(act_all_list) == len(module.scales)
    assert act_all_list[0].shape == (B, NB)
    assert jnp.allclose(act_all, ref_all, atol=1e-3, rtol=1e-3), "mismatch vs reference"

    print("KERNEL_OK")
</pallas_src>

<mosaic_0001>
module attributes {stable_mosaic.version = 11 : i64} {
  func.func @fused_relation_kernel(%arg0: i32, %arg1: memref<4x24x256xbf16, #tpu.memory_space<vmem>>, %arg2: memref<4x256x128xbf16, #tpu.memory_space<vmem>>, %arg3: memref<4x1x128xf32, #tpu.memory_space<vmem>>, %arg4: memref<4x128x128xbf16, #tpu.memory_space<vmem>>, %arg5: memref<4x1x128xf32, #tpu.memory_space<vmem>>, %arg6: memref<1x8x96xf32, #tpu.memory_space<vmem>>, %arg7: memref<8x128xf32, #tpu.memory_space<vmem>>, %arg8: memref<96x128xf32, #tpu.memory_space<vmem>>) attributes {dimension_semantics = [#tpu.dimension_semantics<parallel>], iteration_bounds = array<i64: 2>, scalar_prefetch = 0 : i64, scratch_operands = 1 : i64, tpu.core_type = #tpu.core_type<tc>, window_params = [{transform_indices = @transform_0, window_bounds = array<i64: 4, 24, 256>}, {transform_indices = @transform_1, window_bounds = array<i64: 4, 256, 128>}, {transform_indices = @transform_2, window_bounds = array<i64: 4, 1, 128>}, {transform_indices = @transform_3, window_bounds = array<i64: 4, 128, 128>}, {transform_indices = @transform_4, window_bounds = array<i64: 4, 1, 128>}, {transform_indices = @transform_5, window_bounds = array<i64: 1, 8, 96>}, {transform_indices = @transform_6, window_bounds = array<i64: 8, 128>}]} {
    %c0 = arith.constant 0 : index
    %c0_0 = arith.constant 0 : index
    %c0_1 = arith.constant 0 : index
    %0 = vector.load %arg1[%c0, %c0_0, %c0_1] : memref<4x24x256xbf16, #tpu.memory_space<vmem>>, vector<1x24x256xbf16>
    %1 = vector.shape_cast %0 : vector<1x24x256xbf16> to vector<24x256xbf16>
    %c0_2 = arith.constant 0 : index
    %c0_3 = arith.constant 0 : index
    %c0_4 = arith.constant 0 : index
    %2 = vector.load %arg2[%c0_2, %c0_3, %c0_4] : memref<4x256x128xbf16, #tpu.memory_space<vmem>>, vector<1x256x128xbf16>
    %3 = vector.shape_cast %2 : vector<1x256x128xbf16> to vector<256x128xbf16>
    %cst = arith.constant dense<0.000000e+00> : vector<24x128xf32>
    %4 = tpu.matmul %1, %3, %cst {dimension_numbers = #tpu.dot_dimension_numbers<[1], [0], [0], [1], [0, 0, 1, 1], [], []>} : vector<24x256xbf16>, vector<256x128xbf16>, vector<24x128xf32> -> vector<24x128xf32>
    %c0_5 = arith.constant 0 : index
    %c0_6 = arith.constant 0 : index
    %c0_7 = arith.constant 0 : index
    %5 = vector.load %arg3[%c0_5, %c0_6, %c0_7] : memref<4x1x128xf32, #tpu.memory_space<vmem>>, vector<1x1x128xf32>
    %6 = vector.shape_cast %5 : vector<1x1x128xf32> to vector<1x128xf32>
    %7 = vector.broadcast %6 : vector<1x128xf32> to vector<24x128xf32>
    %8 = arith.addf %4, %7 : vector<24x128xf32>
    %cst_8 = arith.constant 0.000000e+00 : f32
    %9 = vector.broadcast %cst_8 : f32 to vector<24x128xf32>
    %10 = arith.maximumf %8, %9 : vector<24x128xf32>
    %11 = arith.truncf %10 : vector<24x128xf32> to vector<24x128xbf16>
    %c0_9 = arith.constant 0 : index
    %c0_10 = arith.constant 0 : index
    %c0_11 = arith.constant 0 : index
    %12 = vector.load %arg4[%c0_9, %c0_10, %c0_11] : memref<4x128x128xbf16, #tpu.memory_space<vmem>>, vector<1x128x128xbf16>
    %13 = vector.shape_cast %12 : vector<1x128x128xbf16> to vector<128x128xbf16>
    %cst_12 = arith.constant dense<0.000000e+00> : vector<24x128xf32>
    %14 = tpu.matmul %11, %13, %cst_12 {dimension_numbers = #tpu.dot_dimension_numbers<[1], [0], [0], [1], [0, 0, 1, 1], [], []>} : vector<24x128xbf16>, vector<128x128xbf16>, vector<24x128xf32> -> vector<24x128xf32>
    %c0_13 = arith.constant 0 : index
    %c0_14 = arith.constant 0 : index
    %c0_15 = arith.constant 0 : index
    %15 = vector.load %arg5[%c0_13, %c0_14, %c0_15] : memref<4x1x128xf32, #tpu.memory_space<vmem>>, vector<1x1x128xf32>
    %16 = vector.shape_cast %15 : vector<1x1x128xf32> to vector<1x128xf32>
    %17 = vector.broadcast %16 : vector<1x128xf32> to vector<24x128xf32>
    %18 = arith.addf %14, %17 : vector<24x128xf32>
    %cst_16 = arith.constant 0.000000e+00 : f32
    %19 = vector.broadcast %cst_16 : f32 to vector<24x128xf32>
    %20 = arith.maximumf %18, %19 : vector<24x128xf32>
    %c0_17 = arith.constant 0 : index
    %c0_18 = arith.constant 0 : index
    %21 = vector.load %arg8[%c0_17, %c0_18] : memref<96x128xf32, #tpu.memory_space<vmem>>, vector<24x128xf32>
    tpu.vector_store %arg8[%c0_17, %c0_18], %20 {strides = array<i32>} : memref<96x128xf32, #tpu.memory_space<vmem>>, vector<24x128xf32>,
    %c1 = arith.constant 1 : index
    %c0_19 = arith.constant 0 : index
    %c0_20 = arith.constant 0 : index
    %22 = vector.load %arg1[%c1, %c0_19, %c0_20] : memref<4x24x256xbf16, #tpu.memory_space<vmem>>, vector<1x24x256xbf16>
    %23 = vector.shape_cast %22 : vector<1x24x256xbf16> to vector<24x256xbf16>
    %c1_21 = arith.constant 1 : index
    %c0_22 = arith.constant 0 : index
    %c0_23 = arith.constant 0 : index
    %24 = vector.load %arg2[%c1_21, %c0_22, %c0_23] : memref<4x256x128xbf16, #tpu.memory_space<vmem>>, vector<1x256x128xbf16>
    %25 = vector.shape_cast %24 : vector<1x256x128xbf16> to vector<256x128xbf16>
    %cst_24 = arith.constant dense<0.000000e+00> : vector<24x128xf32>
    %26 = tpu.matmul %23, %25, %cst_24 {dimension_numbers = #tpu.dot_dimension_numbers<[1], [0], [0], [1], [0, 0, 1, 1], [], []>} : vector<24x256xbf16>, vector<256x128xbf16>, vector<24x128xf32> -> vector<24x128xf32>
    %c1_25 = arith.constant 1 : index
    %c0_26 = arith.constant 0 : index
    %c0_27 = arith.constant 0 : index
    %27 = vector.load %arg3[%c1_25, %c0_26, %c0_27] : memref<4x1x128xf32, #tpu.memory_space<vmem>>, vector<1x1x128xf32>
    %28 = vector.shape_cast %27 : vector<1x1x128xf32> to vector<1x128xf32>
    %29 = vector.broadcast %28 : vector<1x128xf32> to vector<24x128xf32>
    %30 = arith.addf %26, %29 : vector<24x128xf32>
    %cst_28 = arith.constant 0.000000e+00 : f32
    %31 = vector.broadcast %cst_28 : f32 to vector<24x128xf32>
    %32 = arith.maximumf %30, %31 : vector<24x128xf32>
    %33 = arith.truncf %32 : vector<24x128xf32> to vector<24x128xbf16>
    %c1_29 = arith.constant 1 : index
    %c0_30 = arith.constant 0 : index
    %c0_31 = arith.constant 0 : index
    %34 = vector.load %arg4[%c1_29, %c0_30, %c0_31] : memref<4x128x128xbf16, #tpu.memory_space<vmem>>, vector<1x128x128xbf16>
    %35 = vector.shape_cast %34 : vector<1x128x128xbf16> to vector<128x128xbf16>
    %cst_32 = arith.constant dense<0.000000e+00> : vector<24x128xf32>
    %36 = tpu.matmul %33, %35, %cst_32 {dimension_numbers = #tpu.dot_dimension_numbers<[1], [0], [0], [1], [0, 0, 1, 1], [], []>} : vector<24x128xbf16>, vector<128x128xbf16>, vector<24x128xf32> -> vector<24x128xf32>
    %c1_33 = arith.constant 1 : index
    %c0_34 = arith.constant 0 : index
    %c0_35 = arith.constant 0 : index
    %37 = vector.load %arg5[%c1_33, %c0_34, %c0_35] : memref<4x1x128xf32, #tpu.memory_space<vmem>>, vector<1x1x128xf32>
    %38 = vector.shape_cast %37 : vector<1x1x128xf32> to vector<1x128xf32>
    %39 = vector.broadcast %38 : vector<1x128xf32> to vector<24x128xf32>
    %40 = arith.addf %36, %39 : vector<24x128xf32>
    %cst_36 = arith.constant 0.000000e+00 : f32
    %41 = vector.broadcast %cst_36 : f32 to vector<24x128xf32>
    %42 = arith.maximumf %40, %41 : vector<24x128xf32>
    %c24 = arith.constant 24 : index
    %c0_37 = arith.constant 0 : index
    %43 = vector.load %arg8[%c24, %c0_37] : memref<96x128xf32, #tpu.memory_space<vmem>>, vector<24x128xf32>
    tpu.vector_store %arg8[%c24, %c0_37], %42 {strides = array<i32>} : memref<96x128xf32, #tpu.memory_space<vmem>>, vector<24x128xf32>,
    %c2 = arith.constant 2 : index
    %c0_38 = arith.constant 0 : index
    %c0_39 = arith.constant 0 : index
    %44 = vector.load %arg1[%c2, %c0_38, %c0_39] : memref<4x24x256xbf16, #tpu.memory_space<vmem>>, vector<1x24x256xbf16>
    %45 = vector.shape_cast %44 : vector<1x24x256xbf16> to vector<24x256xbf16>
    %c2_40 = arith.constant 2 : index
    %c0_41 = arith.constant 0 : index
    %c0_42 = arith.constant 0 : index
    %46 = vector.load %arg2[%c2_40, %c0_41, %c0_42] : memref<4x256x128xbf16, #tpu.memory_space<vmem>>, vector<1x256x128xbf16>
    %47 = vector.shape_cast %46 : vector<1x256x128xbf16> to vector<256x128xbf16>
    %cst_43 = arith.constant dense<0.000000e+00> : vector<24x128xf32>
    %48 = tpu.matmul %45, %47, %cst_43 {dimension_numbers = #tpu.dot_dimension_numbers<[1], [0], [0], [1], [0, 0, 1, 1], [], []>} : vector<24x256xbf16>, vector<256x128xbf16>, vector<24x128xf32> -> vector<24x128xf32>
    %c2_44 = arith.constant 2 : index
    %c0_45 = arith.constant 0 : index
    %c0_46 = arith.constant 0 : index
    %49 = vector.load %arg3[%c2_44, %c0_45, %c0_46] : memref<4x1x128xf32, #tpu.memory_space<vmem>>, vector<1x1x128xf32>
    %50 = vector.shape_cast %49 : vector<1x1x128xf32> to vector<1x128xf32>
    %51 = vector.broadcast %50 : vector<1x128xf32> to vector<24x128xf32>
    %52 = arith.addf %48, %51 : vector<24x128xf32>
    %cst_47 = arith.constant 0.000000e+00 : f32
    %53 = vector.broadcast %cst_47 : f32 to vector<24x128xf32>
    %54 = arith.maximumf %52, %53 : vector<24x128xf32>
    %55 = arith.truncf %54 : vector<24x128xf32> to vector<24x128xbf16>
    %c2_48 = arith.constant 2 : index
    %c0_49 = arith.constant 0 : index
    %c0_50 = arith.constant 0 : index
    %56 = vector.load %arg4[%c2_48, %c0_49, %c0_50] : memref<4x128x128xbf16, #tpu.memory_space<vmem>>, vector<1x128x128xbf16>
    %57 = vector.shape_cast %56 : vector<1x128x128xbf16> to vector<128x128xbf16>
    %cst_51 = arith.constant dense<0.000000e+00> : vector<24x128xf32>
    %58 = tpu.matmul %55, %57, %cst_51 {dimension_numbers = #tpu.dot_dimension_numbers<[1], [0], [0], [1], [0, 0, 1, 1], [], []>} : vector<24x128xbf16>, vector<128x128xbf16>, vector<24x128xf32> -> vector<24x128xf32>
    %c2_52 = arith.constant 2 : index
    %c0_53 = arith.constant 0 : index
    %c0_54 = arith.constant 0 : index
    %59 = vector.load %arg5[%c2_52, %c0_53, %c0_54] : memref<4x1x128xf32, #tpu.memory_space<vmem>>, vector<1x1x128xf32>
    %60 = vector.shape_cast %59 : vector<1x1x128xf32> to vector<1x128xf32>
    %61 = vector.broadcast %60 : vector<1x128xf32> to vector<24x128xf32>
    %62 = arith.addf %58, %61 : vector<24x128xf32>
    %cst_55 = arith.constant 0.000000e+00 : f32
    %63 = vector.broadcast %cst_55 : f32 to vector<24x128xf32>
    %64 = arith.maximumf %62, %63 : vector<24x128xf32>
    %c48 = arith.constant 48 : index
    %c0_56 = arith.constant 0 : index
    %65 = vector.load %arg8[%c48, %c0_56] : memref<96x128xf32, #tpu.memory_space<vmem>>, vector<24x128xf32>
    tpu.vector_store %arg8[%c48, %c0_56], %64 {strides = array<i32>} : memref<96x128xf32, #tpu.memory_space<vmem>>, vector<24x128xf32>,
    %c3 = arith.constant 3 : index
    %c0_57 = arith.constant 0 : index
    %c0_58 = arith.constant 0 : index
    %66 = vector.load %arg1[%c3, %c0_57, %c0_58] : memref<4x24x256xbf16, #tpu.memory_space<vmem>>, vector<1x24x256xbf16>
    %67 = vector.shape_cast %66 : vector<1x24x256xbf16> to vector<24x256xbf16>
    %c3_59 = arith.constant 3 : index
    %c0_60 = arith.constant 0 : index
    %c0_61 = arith.constant 0 : index
    %68 = vector.load %arg2[%c3_59, %c0_60, %c0_61] : memref<4x256x128xbf16, #tpu.memory_space<vmem>>, vector<1x256x128xbf16>
    %69 = vector.shape_cast %68 : vector<1x256x128xbf16> to vector<256x128xbf16>
    %cst_62 = arith.constant dense<0.000000e+00> : vector<24x128xf32>
    %70 = tpu.matmul %67, %69, %cst_62 {dimension_numbers = #tpu.dot_dimension_numbers<[1], [0], [0], [1], [0, 0, 1, 1], [], []>} : vector<24x256xbf16>, vector<256x128xbf16>, vector<24x128xf32> -> vector<24x128xf32>
    %c3_63 = arith.constant 3 : index
    %c0_64 = arith.constant 0 : index
    %c0_65 = arith.constant 0 : index
    %71 = vector.load %arg3[%c3_63, %c0_64, %c0_65] : memref<4x1x128xf32, #tpu.memory_space<vmem>>, vector<1x1x128xf32>
    %72 = vector.shape_cast %71 : vector<1x1x128xf32> to vector<1x128xf32>
    %73 = vector.broadcast %72 : vector<1x128xf32> to vector<24x128xf32>
    %74 = arith.addf %70, %73 : vector<24x128xf32>
    %cst_66 = arith.constant 0.000000e+00 : f32
    %75 = vector.broadcast %cst_66 : f32 to vector<24x128xf32>
    %76 = arith.maximumf %74, %75 : vector<24x128xf32>
    %77 = arith.truncf %76 : vector<24x128xf32> to vector<24x128xbf16>
    %c3_67 = arith.constant 3 : index
    %c0_68 = arith.constant 0 : index
    %c0_69 = arith.constant 0 : index
    %78 = vector.load %arg4[%c3_67, %c0_68, %c0_69] : memref<4x128x128xbf16, #tpu.memory_space<vmem>>, vector<1x128x128xbf16>
    %79 = vector.shape_cast %78 : vector<1x128x128xbf16> to vector<128x128xbf16>
    %cst_70 = arith.constant dense<0.000000e+00> : vector<24x128xf32>
    %80 = tpu.matmul %77, %79, %cst_70 {dimension_numbers = #tpu.dot_dimension_numbers<[1], [0], [0], [1], [0, 0, 1, 1], [], []>} : vector<24x128xbf16>, vector<128x128xbf16>, vector<24x128xf32> -> vector<24x128xf32>
    %c3_71 = arith.constant 3 : index
    %c0_72 = arith.constant 0 : index
    %c0_73 = arith.constant 0 : index
    %81 = vector.load %arg5[%c3_71, %c0_72, %c0_73] : memref<4x1x128xf32, #tpu.memory_space<vmem>>, vector<1x1x128xf32>
    %82 = vector.shape_cast %81 : vector<1x1x128xf32> to vector<1x128xf32>
    %83 = vector.broadcast %82 : vector<1x128xf32> to vector<24x128xf32>
    %84 = arith.addf %80, %83 : vector<24x128xf32>
    %cst_74 = arith.constant 0.000000e+00 : f32
    %85 = vector.broadcast %cst_74 : f32 to vector<24x128xf32>
    %86 = arith.maximumf %84, %85 : vector<24x128xf32>
    %c72 = arith.constant 72 : index
    %c0_75 = arith.constant 0 : index
    %87 = vector.load %arg8[%c72, %c0_75] : memref<96x128xf32, #tpu.memory_space<vmem>>, vector<24x128xf32>
    tpu.vector_store %arg8[%c72, %c0_75], %86 {strides = array<i32>} : memref<96x128xf32, #tpu.memory_space<vmem>>, vector<24x128xf32>,
    %c0_76 = arith.constant 0 : index
    %c0_77 = arith.constant 0 : index
    %c0_78 = arith.constant 0 : index
    %88 = vector.load %arg6[%c0_76, %c0_77, %c0_78] : memref<1x8x96xf32, #tpu.memory_space<vmem>>, vector<1x8x96xf32>
    %89 = vector.shape_cast %88 : vector<1x8x96xf32> to vector<8x96xf32>
    %c0_79 = arith.constant 0 : index
    %c0_80 = arith.constant 0 : index
    %90 = vector.load %arg8[%c0_79, %c0_80] : memref<96x128xf32, #tpu.memory_space<vmem>>, vector<96x128xf32>
    %cst_81 = arith.constant dense<0.000000e+00> : vector<8x128xf32>
    %91 = tpu.matmul %89, %90, %cst_81 {dimension_numbers = #tpu.dot_dimension_numbers<[1], [0], [0], [1], [0, 0, 1, 1], [], []>} : vector<8x96xf32>, vector<96x128xf32>, vector<8x128xf32> -> vector<8x128xf32>
    %c0_82 = arith.constant 0 : index
    %c0_83 = arith.constant 0 : index
    %92 = vector.load %arg7[%c0_82, %c0_83] : memref<8x128xf32, #tpu.memory_space<vmem>>, vector<8x128xf32>
    tpu.vector_store %arg7[%c0_82, %c0_83], %91 {strides = array<i32>} : memref<8x128xf32, #tpu.memory_space<vmem>>, vector<8x128xf32>,
    return
  }
  func.func @transform_0(%arg0: i32) -> (i32, i32, i32) {
    %c0_i32 = arith.constant 0 : i32
    %c0_i32_0 = arith.constant 0 : i32
    %c0_i32_1 = arith.constant 0 : i32
    return %arg0, %c0_i32, %c0_i32_0 : i32, i32, i32
  }
  func.func @transform_1(%arg0: i32) -> (i32, i32, i32) {
    %c0_i32 = arith.constant 0 : i32
    %c0_i32_0 = arith.constant 0 : i32
    %c0_i32_1 = arith.constant 0 : i32
    return %arg0, %c0_i32, %c0_i32_0 : i32, i32, i32
  }
  func.func @transform_2(%arg0: i32) -> (i32, i32, i32) {
    %c0_i32 = arith.constant 0 : i32
    %c0_i32_0 = arith.constant 0 : i32
    %c0_i32_1 = arith.constant 0 : i32
    return %arg0, %c0_i32, %c0_i32_0 : i32, i32, i32
  }
  func.func @transform_3(%arg0: i32) -> (i32, i32, i32) {
    %c0_i32 = arith.constant 0 : i32
    %c0_i32_0 = arith.constant 0 : i32
    %c0_i32_1 = arith.constant 0 : i32
    return %arg0, %c0_i32, %c0_i32_0 : i32, i32, i32
  }
  func.func @transform_4(%arg0: i32) -> (i32, i32, i32) {
    %c0_i32 = arith.constant 0 : i32
    %c0_i32_0 = arith.constant 0 : i32
    %c0_i32_1 = arith.constant 0 : i32
    return %arg0, %c0_i32, %c0_i32_0 : i32, i32, i32
  }
  func.func @transform_5(%arg0: i32) -> (i32, i32, i32) {
    %c0_i32 = arith.constant 0 : i32
    %c0_i32_0 = arith.constant 0 : i32
    %c0_i32_1 = arith.constant 0 : i32
    return %arg0, %c0_i32, %c0_i32_0 : i32, i32, i32
  }
  func.func @transform_6(%arg0: i32) -> (i32, i32) {
    %c0_i32 = arith.constant 0 : i32
    %c0_i32_0 = arith.constant 0 : i32
    return %arg0, %c0_i32 : i32, i32
  }
}

</mosaic_0001>

<llo_original>
// kernel: tpu_custom_call.1
$region0: #{tpu_custom_call.1}
  #allocation0 [shape = 'u32[]', space=smem, size = 0x4, offset = 0x4, fixed_abs, tag = 'smem constant byte address 0x4 - core index']
  #allocation1 [shape = 'u32[144,128]{1,0:T(1,128)}', space=vmem, size = 0x12000, scoped, tag = 'internal scratch']
  #allocation2 [shape = 'f32[96,128]{1,0:T(8,128)}', space=vmem, size = 0xc000, scoped, tag = 'scratch operand']
  %s0 = inlined_call_operand.hbm [shape: bf16[8,24,256], index: 0, kind: input, shape index: {}]
  %s1 = inlined_call_operand.hbm [shape: bf16[8,256,128], index: 1, kind: input, shape index: {}]
  %s2 = inlined_call_operand.hbm [shape: f32[8,1,128], index: 2, kind: input, shape index: {}]
  %s3 = inlined_call_operand.hbm [shape: bf16[8,128,128], index: 3, kind: input, shape index: {}]
  %s4 = inlined_call_operand.hbm [shape: f32[8,1,128], index: 4, kind: input, shape index: {}]
  %s5 = inlined_call_operand.vmem [shape: f32[2,8,96], index: 5, kind: input, shape index: {}]
  %s6 = inlined_call_operand.hbm [shape: f32[16,128], index: 6, kind: output, shape index: {}]
  %s7 = sld [smem:[#allocation0]]
  $region77: #{tpu_custom_call.1} parent=0
    _
  %s9 = ssub.s32 1, %s7
  %s10 = scalar_select 0, %s9, %s7
  $region1: #{tpu_custom_call.1} parent=0
    #allocation3 [shape = 'u8[98304]{0}', space=vmem, size = 0x18000, scoped, tag = 'input window, operand 0']
    #allocation4 [shape = 's32[2]{0}', space=sflag, size = 0x8, scoped, tag = 'scoped memory for tpu_custom_call.1']
    #allocation5 [shape = 's32[2]{0}', space=sflag, size = 0x8, scoped, tag = 'scoped memory for tpu_custom_call.1']
    #allocation6 [shape = 'u8[524288]{0}', space=vmem, size = 0x80000, scoped, tag = 'input window, operand 1']
    #allocation7 [shape = 's32[2]{0}', space=sflag, size = 0x8, scoped, tag = 'scoped memory for tpu_custom_call.1']
    #allocation8 [shape = 'u8[4096]{0}', space=vmem, size = 0x1000, scoped, tag = 'input window, operand 2']
    #allocation9 [shape = 'u8[262144]{0}', space=vmem, size = 0x40000, scoped, tag = 'input window, operand 3']
    #allocation10 [shape = 's32[2]{0}', space=sflag, size = 0x8, scoped, tag = 'scoped memory for tpu_custom_call.1']
    #allocation11 [shape = 'u8[4096]{0}', space=vmem, size = 0x1000, scoped, tag = 'input window, operand 4']
    #allocation12 [shape = 'u8[8192]{0}', space=vmem, size = 0x2000, scoped, tag = 'output window, operand 0']
    %11 = vsyncpa [#allocation4], 0
    %s12 = scalar_lea.sflag [#allocation4], 1
    %13 = vsyncpa %s12, 0
    %14 = vsyncpa [#allocation7], 0
    %s15 = scalar_lea.sflag [#allocation7], 1
    %16 = vsyncpa %s15, 0
    %17 = vsyncpa [#allocation10], 0
    %s18 = scalar_lea.sflag [#allocation10], 1
    %19 = vsyncpa %s18, 0
    %20 = vsyncpa [#allocation5], 0
    %s21 = scalar_lea.sflag [#allocation5], 1
    %22 = vsyncpa %s21, 0
    loop: start=0, step=1, limit=4
    $region2: #{tpu_custom_call.1} parent=1 // loop_pre_header
      _
    $region3: #{tpu_custom_call.1} parent=1 // loop_header
      %s24 = sphi 0, %s28
      %p25 = scmp.ge.s32.totalorder %s24, 4
      %s34 = sphi 0, %s36
      %s37 = sphi 0, %s34
      %s38 = sphi 0, %s37
      %s54 = sphi 0, %s38
      %s60 = sphi 0, %s62
      %s63 = sphi 0, %s60
      %s64 = sphi 0, %s63
      %s80 = sphi 0, %s64
      %s86 = sphi 0, %s88
      %s89 = sphi 0, %s86
      %s90 = sphi 0, %s89
      %s106 = sphi 0, %s90
      %s112 = sphi 0, %s114
      %s115 = sphi 0, %s112
      %s116 = sphi 0, %s115
      %s132 = sphi 0, %s116
      %s138 = sphi 0, %s140
      %s141 = sphi 0, %s138
      %s142 = sphi 0, %s141
      %s158 = sphi 0, %s142
      %s164 = sphi 0, %s166
      %s167 = sphi 0, %s164
      %s168 = sphi 0, %s167
      %s184 = sphi 0, %s168
      %s190 = sphi 0, %s192
      %s193 = sphi 0, %s190
      %s194 = sphi 0, %s193
      %s210 = sphi 0, %s194
    $region4: #{tpu_custom_call.1} parent=1 // loop_header_branch
      %27 = sbr.rel (%p25) target = $region8
    $region5: #{tpu_custom_call.1} parent=1 // loop_body
      %s29 = ssub.s32 %s24, 1
      %s30 = ssub.s32 %s24, 2
      %s31 = sadd.s32 %s24, 1
      %s32 = ssub.s32 %s24, %s31
      %p33 = scmp.eq.s32.totalorder %s32, 0
      %s35 = sadd.s32 %s34, 1
      %s36 = scalar_select %p33, %s34, %s35
      %p39 = pneg %p33
      %p40 = scmp.eq.s32.totalorder %s24, 1
      %p41 = por %p39, %p40
      %p42 = scmp.ne.s32.totalorder %s34, %s37
      %p43 = scmp.eq.s32.totalorder %s24, 0
      %p44 = por %p42, %p43
      %p45 = scmp.ne.s32.totalorder %s34, %s37
      %p46 = scmp.eq.s32.totalorder %s29, 1
      %p47 = por %p45, %p46
      %p48 = scmp.ne.s32.totalorder %s37, %s38
      %p49 = scmp.eq.s32.totalorder %s29, 0
      %p50 = por %p48, %p49
      %p51 = scmp.ne.s32.totalorder %s37, %s38
      %p52 = scmp.eq.s32.totalorder %s30, 1
      %p53 = por %p51, %p52
      %p55 = scmp.ne.s32.totalorder %s38, %s54
      %p56 = scmp.eq.s32.totalorder %s30, 0
      %p57 = por %p55, %p56
      %s58 = ssub.s32 %s24, %s31
      %p59 = scmp.eq.s32.totalorder %s58, 0
      %s61 = sadd.s32 %s60, 1
      %s62 = scalar_select %p59, %s60, %s61
      %p65 = pneg %p59
      %p66 = scmp.eq.s32.totalorder %s24, 1
      %p67 = por %p65, %p66
      %p68 = scmp.ne.s32.totalorder %s60, %s63
      %p69 = scmp.eq.s32.totalorder %s24, 0
      %p70 = por %p68, %p69
      %p71 = scmp.ne.s32.totalorder %s60, %s63
      %p72 = scmp.eq.s32.totalorder %s29, 1
      %p73 = por %p71, %p72
      %p74 = scmp.ne.s32.totalorder %s63, %s64
      %p75 = scmp.eq.s32.totalorder %s29, 0
      %p76 = por %p74, %p75
      %p77 = scmp.ne.s32.totalorder %s63, %s64
      %p78 = scmp.eq.s32.totalorder %s30, 1
      %p79 = por %p77, %p78
      %p81 = scmp.ne.s32.totalorder %s64, %s80
      %p82 = scmp.eq.s32.totalorder %s30, 0
      %p83 = por %p81, %p82
      %s84 = ssub.s32 %s24, %s31
      %p85 = scmp.eq.s32.totalorder %s84, 0
      %s87 = sadd.s32 %s86, 1
      %s88 = scalar_select %p85, %s86, %s87
      %p91 = pneg %p85
      %p92 = scmp.eq.s32.totalorder %s24, 1
      %p93 = por %p91, %p92
      %p94 = scmp.ne.s32.totalorder %s86, %s89
      %p95 = scmp.eq.s32.totalorder %s24, 0
      %p96 = por %p94, %p95
      %p97 = scmp.ne.s32.totalorder %s86, %s89
      %p98 = scmp.eq.s32.totalorder %s29, 1
      %p99 = por %p97, %p98
      %p100 = scmp.ne.s32.totalorder %s89, %s90
      %p101 = scmp.eq.s32.totalorder %s29, 0
      %p102 = por %p100, %p101
      %p103 = scmp.ne.s32.totalorder %s89, %s90
      %p104 = scmp.eq.s32.totalorder %s30, 1
      %p105 = por %p103, %p104
      %p107 = scmp.ne.s32.totalorder %s90, %s106
      %p108 = scmp.eq.s32.totalorder %s30, 0
      %p109 = por %p107, %p108
      %s110 = ssub.s32 %s24, %s31
      %p111 = scmp.eq.s32.totalorder %s110, 0
      %s113 = sadd.s32 %s112, 1
      %s114 = scalar_select %p111, %s112, %s113
      %p117 = pneg %p111
      %p118 = scmp.eq.s32.totalorder %s24, 1
      %p119 = por %p117, %p118
      %p120 = scmp.ne.s32.totalorder %s112, %s115
      %p121 = scmp.eq.s32.totalorder %s24, 0
      %p122 = por %p120, %p121
      %p123 = scmp.ne.s32.totalorder %s112, %s115
      %p124 = scmp.eq.s32.totalorder %s29, 1
      %p125 = por %p123, %p124
      %p126 = scmp.ne.s32.totalorder %s115, %s116
      %p127 = scmp.eq.s32.totalorder %s29, 0
      %p128 = por %p126, %p127
      %p129 = scmp.ne.s32.totalorder %s115, %s116
      %p130 = scmp.eq.s32.totalorder %s30, 1
      %p131 = por %p129, %p130
      %p133 = scmp.ne.s32.totalorder %s116, %s132
      %p134 = scmp.eq.s32.totalorder %s30, 0
      %p135 = por %p133, %p134
      %s136 = ssub.s32 %s24, %s31
      %p137 = scmp.eq.s32.totalorder %s136, 0
      %s139 = sadd.s32 %s138, 1
      %s140 = scalar_select %p137, %s138, %s139
      %p143 = pneg %p137
      %p144 = scmp.eq.s32.totalorder %s24, 1
      %p145 = por %p143, %p144
      %p146 = scmp.ne.s32.totalorder %s138, %s141
      %p147 = scmp.eq.s32.totalorder %s24, 0
      %p148 = por %p146, %p147
      %p149 = scmp.ne.s32.totalorder %s138, %s141
      %p150 = scmp.eq.s32.totalorder %s29, 1
      %p151 = por %p149, %p150
      %p152 = scmp.ne.s32.totalorder %s141, %s142
      %p153 = scmp.eq.s32.totalorder %s29, 0
      %p154 = por %p152, %p153
      %p155 = scmp.ne.s32.totalorder %s141, %s142
      %p156 = scmp.eq.s32.totalorder %s30, 1
      %p157 = por %p155, %p156
      %p159 = scmp.ne.s32.totalorder %s142, %s158
      %p160 = scmp.eq.s32.totalorder %s30, 0
      %p161 = por %p159, %p160
      %s162 = ssub.s32 %s24, %s31
      %p163 = scmp.eq.s32.totalorder %s162, 0
      %s165 = sadd.s32 %s164, 1
      %s166 = scalar_select %p163, %s164, %s165
      %p169 = pneg %p163
      %p170 = scmp.eq.s32.totalorder %s24, 1
      %p171 = por %p169, %p170
      %p172 = scmp.ne.s32.totalorder %s164, %s167
      %p173 = scmp.eq.s32.totalorder %s24, 0
      %p174 = por %p172, %p173
      %p175 = scmp.ne.s32.totalorder %s164, %s167
      %p176 = scmp.eq.s32.totalorder %s29, 1
      %p177 = por %p175, %p176
      %p178 = scmp.ne.s32.totalorder %s167, %s168
      %p179 = scmp.eq.s32.totalorder %s29, 0
      %p180 = por %p178, %p179
      %p181 = scmp.ne.s32.totalorder %s167, %s168
      %p182 = scmp.eq.s32.totalorder %s30, 1
      %p183 = por %p181, %p182
      %p185 = scmp.ne.s32.totalorder %s168, %s184
      %p186 = scmp.eq.s32.totalorder %s30, 0
      %p187 = por %p185, %p186
      %s188 = ssub.s32 %s24, %s31
      %p189 = scmp.eq.s32.totalorder %s188, 0
      %s191 = sadd.s32 %s190, 1
      %s192 = scalar_select %p189, %s190, %s191
      %p195 = pneg %p189
      %p196 = scmp.eq.s32.totalorder %s24, 1
      %p197 = por %p195, %p196
      %p198 = scmp.ne.s32.totalorder %s190, %s193
      %p199 = scmp.eq.s32.totalorder %s24, 0
      %p200 = por %p198, %p199
      %p201 = scmp.ne.s32.totalorder %s190, %s193
      %p202 = scmp.eq.s32.totalorder %s29, 1
      %p203 = por %p201, %p202
      %p204 = scmp.ne.s32.totalorder %s193, %s194
      %p205 = scmp.eq.s32.totalorder %s29, 0
      %p206 = por %p204, %p205
      %p207 = scmp.ne.s32.totalorder %s193, %s194
      %p208 = scmp.eq.s32.totalorder %s30, 1
      %p209 = por %p207, %p208
      %p211 = scmp.ne.s32.totalorder %s194, %s210
      %p212 = scmp.eq.s32.totalorder %s30, 0
      %p213 = por %p211, %p212
      %p214 = scmp.le.s32.totalorder 1, %s24
      %p215 = scmp.lt.s32.totalorder %s24, 3
      %p216 = pnand %p214, %p215
      %p217 = pneg %p216
      // Predicated region
      $region9: #{tpu_custom_call.1} parent=5 // pred_check
        _
      $region10: #{tpu_custom_call.1} parent=5 // pred_check_branch
        %219 = sbr.rel (%p216) target = $region12
      $region11: #{tpu_custom_call.1} parent=5 // pred_region
        %s220 = ssub.s32 %s24, 1
      $region12: #{tpu_custom_call.1} parent=5 // pred_fallthru
        _
      %p221 = scmp.lt.s32.totalorder %s24, 2
      // Predicated region
      $region13: #{tpu_custom_call.1} parent=5 // pred_check
        %p222 = pneg %p221
      $region14: #{tpu_custom_call.1} parent=5 // pred_check_branch
        %224 = sbr.rel (%p222) target = $region16
      $region15: #{tpu_custom_call.1} parent=5 // pred_region
        // Predicated region
        $region17: #{tpu_custom_call.1} parent=15 // pred_check
          %p225 = pneg %p44
        $region18: #{tpu_custom_call.1} parent=15 // pred_check_branch
          %227 = sbr.rel (%p225) target = $region20
        $region19: #{tpu_custom_call.1} parent=15 // pred_region
          %s228 = sand.u32 %s34, 1
          %s229 = scalar_lea.sflag [#allocation4], %s228
          %s230 = sand.u32 %s34, 1
          %s231 = smul.addr %s230, 96
          %s232 = scalar_lea.vmem [#allocation3], %s231
          %s233 = smul.u32 4, %s24
          %s235 = ssub.s32 1536, 1536
          %236 = vsyncadd %s229, %s235
          %s237 = smul.addr %s233, 6
          %s238 = smul.addr %s237, 64
          %s239 = scalar_lea.hbm %s0, %s238
          %s240 = sshll.u32 %s232, 4
          %s241 = int_to_ptr.vmem [resolvable:$true] %s240
          %246 = dma.hbm_to_vmem [thread:$0]  %s239, 1536, %s241, %s229, 128, 128, 8
        $region20: #{tpu_custom_call.1} parent=15 // pred_fallthru
          _
        // Predicated region
        $region21: #{tpu_custom_call.1} parent=15 // pred_check
          %p247 = pneg %p70
        $region22: #{tpu_custom_call.1} parent=15 // pred_check_branch
          %249 = sbr.rel (%p247) target = $region24
        $region23: #{tpu_custom_call.1} parent=15 // pred_region
          %s250 = sand.u32 %s24, 1
          %s251 = scalar_lea.sflag [#allocation7], %s250
          %s252 = sand.u32 %s60, 1
          %s253 = smul.addr %s252, 512
          %s254 = scalar_lea.vmem [#allocation6], %s253
          %s255 = smul.u32 4, %s24
          %s257 = ssub.s32 8192, 8192
          %258 = vsyncadd %s251, %s257
          %s259 = smul.addr %s255, 32
          %s260 = smul.addr %s259, 64
          %s261 = scalar_lea.hbm %s1, %s260
          %s262 = sshll.u32 %s254, 4
          %s263 = int_to_ptr.vmem [resolvable:$true] %s262
          %268 = dma.hbm_to_vmem [thread:$0]  %s261, 8192, %s263, %s251, 64, 64, 4
        $region24: #{tpu_custom_call.1} parent=15 // pred_fallthru
          _
        // Predicated region
        $region25: #{tpu_custom_call.1} parent=15 // pred_check
          %p269 = pneg %p96
        $region26: #{tpu_custom_call.1} parent=15 // pred_check_branch
          %271 = sbr.rel (%p269) target = $region28
        $region27: #{tpu_custom_call.1} parent=15 // pred_region
          %s272 = sand.u32 %s24, 1
          %s273 = scalar_lea.sflag [#allocation7], %s272
          %s274 = sand.u32 %s86, 1
          %s275 = smul.addr %s274, 4
          %s276 = scalar_lea.vmem [#allocation8], %s275
          %s277 = smul.u32 4, %s24
          %s279 = ssub.s32 64, 64
          %280 = vsyncadd %s273, %s279
          %s281 = smul.addr %s277, 16
          %s282 = scalar_lea.hbm %s2, %s281
          %s283 = sshll.u32 %s276, 4
          %s284 = int_to_ptr.vmem [resolvable:$true] %s283
          %289 = dma.hbm_to_vmem [thread:$0]  %s282, 64, %s284, %s273, 16, 16, 1
        $region28: #{tpu_custom_call.1} parent=15 // pred_fallthru
          _
        // Predicated region
        $region29: #{tpu_custom_call.1} parent=15 // pred_check
          %p290 = pneg %p122
        $region30: #{tpu_custom_call.1} parent=15 // pred_check_branch
          %292 = sbr.rel (%p290) target = $region32
        $region31: #{tpu_custom_call.1} parent=15 // pred_region
          %s293 = sand.u32 %s24, 1
          %s294 = scalar_lea.sflag [#allocation10], %s293
          %s295 = sand.u32 %s112, 1
          %s296 = smul.addr %s295, 256
          %s297 = scalar_lea.vmem [#allocation9], %s296
          %s298 = smul.u32 4, %s24
          %s300 = ssub.s32 4096, 4096
          %301 = vsyncadd %s294, %s300
          %s302 = smul.addr %s298, 16
          %s303 = smul.addr %s302, 64
          %s304 = scalar_lea.hbm %s3, %s303
          %s305 = sshll.u32 %s297, 4
          %s306 = int_to_ptr.vmem [resolvable:$true] %s305
          %311 = dma.hbm_to_vmem [thread:$0]  %s304, 4096, %s306, %s294, 64, 64, 4
        $region32: #{tpu_custom_call.1} parent=15 // pred_fallthru
          _
        // Predicated region
        $region33: #{tpu_custom_call.1} parent=15 // pred_check
          %p312 = pneg %p148
        $region34: #{tpu_custom_call.1} parent=15 // pred_check_branch
          %314 = sbr.rel (%p312) target = $region36
        $region35: #{tpu_custom_call.1} parent=15 // pred_region
          %s315 = sand.u32 %s24, 1
          %s316 = scalar_lea.sflag [#allocation10], %s315
          %s317 = sand.u32 %s138, 1
          %s318 = smul.addr %s317, 4
          %s319 = scalar_lea.vmem [#allocation11], %s318
          %s320 = smul.u32 4, %s24
          %s322 = ssub.s32 64, 64
          %323 = vsyncadd %s316, %s322
          %s324 = smul.addr %s320, 16
          %s325 = scalar_lea.hbm %s4, %s324
          %s326 = sshll.u32 %s319, 4
          %s327 = int_to_ptr.vmem [resolvable:$true] %s326
          %332 = dma.hbm_to_vmem [thread:$0]  %s325, 64, %s327, %s316, 16, 16, 1
        $region36: #{tpu_custom_call.1} parent=15 // pred_fallthru
          _
        // Predicated region
        $region37: #{tpu_custom_call.1} parent=15 // pred_check
          %p333 = pneg %p174
        $region38: #{tpu_custom_call.1} parent=15 // pred_check_branch
          %335 = sbr.rel (%p333) target = $region40
        $region39: #{tpu_custom_call.1} parent=15 // pred_region
          %p336 = scmp.lt.s32.totalorder %s24, 1
          %s337 = scalar_select %p336, %s24, 1
          %s338 = smul.addr %s337, 8
          %s339 = scalar_lea.vmem %s5, %s338
        $region40: #{tpu_custom_call.1} parent=15 // pred_fallthru
          _
      $region16: #{tpu_custom_call.1} parent=5 // pred_fallthru
        _
      %p340 = scmp.le.s32.totalorder 1, %s24
      %p341 = scmp.lt.s32.totalorder %s24, 3
      %p342 = pnand %p340, %p341
      %p343 = pneg %p342
      // Predicated region
      $region41: #{tpu_custom_call.1} parent=5 // pred_check
        _
      $region42: #{tpu_custom_call.1} parent=5 // pred_check_branch
        %345 = sbr.rel (%p342) target = $region44
      $region43: #{tpu_custom_call.1} parent=5 // pred_region
        %s346 = ssub.s32 %s24, 1
        %s347 = sand.u32 %s37, 1
        %s348 = scalar_lea.sflag [#allocation4], %s347
        %s349 = sand.u32 %s37, 1
        %s350 = smul.addr %s349, 96
        %s351 = scalar_lea.vmem [#allocation3], %s350
        // Predicated region
        $region45: #{tpu_custom_call.1} parent=43 // pred_check
          %p352 = pneg %p50
        $region46: #{tpu_custom_call.1} parent=43 // pred_check_branch
          %354 = sbr.rel (%p352) target = $region48
        $region47: #{tpu_custom_call.1} parent=43 // pred_region
          %355 = dma.done %s348, 1536
        $region48: #{tpu_custom_call.1} parent=43 // pred_fallthru
          _
        %s356 = sand.u32 %s29, 1
        %s357 = scalar_lea.sflag [#allocation7], %s356
        %s358 = sand.u32 %s63, 1
        %s359 = smul.addr %s358, 512
        %s360 = scalar_lea.vmem [#allocation6], %s359
        // Predicated region
        $region49: #{tpu_custom_call.1} parent=43 // pred_check
          %p361 = pneg %p76
        $region50: #{tpu_custom_call.1} parent=43 // pred_check_branch
          %363 = sbr.rel (%p361) target = $region52
        $region51: #{tpu_custom_call.1} parent=43 // pred_region
          %364 = dma.done %s357, 8192
        $region52: #{tpu_custom_call.1} parent=43 // pred_fallthru
          _
        %s365 = sand.u32 %s29, 1
        %s366 = scalar_lea.sflag [#allocation7], %s365
        %s367 = sand.u32 %s89, 1
        %s368 = smul.addr %s367, 4
        %s369 = scalar_lea.vmem [#allocation8], %s368
        // Predicated region
        $region53: #{tpu_custom_call.1} parent=43 // pred_check
          %p370 = pneg %p102
        $region54: #{tpu_custom_call.1} parent=43 // pred_check_branch
          %372 = sbr.rel (%p370) target = $region56
        $region55: #{tpu_custom_call.1} parent=43 // pred_region
          %373 = dma.done %s366, 64
        $region56: #{tpu_custom_call.1} parent=43 // pred_fallthru
          _
        %s374 = sand.u32 %s29, 1
        %s375 = scalar_lea.sflag [#allocation10], %s374
        %s376 = sand.u32 %s115, 1
        %s377 = smul.addr %s376, 256
        %s378 = scalar_lea.vmem [#allocation9], %s377
        // Predicated region
        $region57: #{tpu_custom_call.1} parent=43 // pred_check
          %p379 = pneg %p128
        $region58: #{tpu_custom_call.1} parent=43 // pred_check_branch
          %381 = sbr.rel (%p379) target = $region60
        $region59: #{tpu_custom_call.1} parent=43 // pred_region
          %382 = dma.done %s375, 4096
        $region60: #{tpu_custom_call.1} parent=43 // pred_fallthru
          _
        %s383 = sand.u32 %s29, 1
        %s384 = scalar_lea.sflag [#allocation10], %s383
        %s385 = sand.u32 %s141, 1
        %s386 = smul.addr %s385, 4
        %s387 = scalar_lea.vmem [#allocation11], %s386
        // Predicated region
        $region61: #{tpu_custom_call.1} parent=43 // pred_check
          %p388 = pneg %p154
        $region62: #{tpu_custom_call.1} parent=43 // pred_check_branch
          %390 = sbr.rel (%p388) target = $region64
        $region63: #{tpu_custom_call.1} parent=43 // pred_region
          %391 = dma.done %s384, 64
        $region64: #{tpu_custom_call.1} parent=43 // pred_fallthru
          _
        %s392 = sand.u32 %s37, 1
        %s393 = scalar_lea.sflag [#allocation4], %s392
        %s394 = sand.u32 %s37, 1
        %s395 = smul.addr %s394, 96
        %s396 = scalar_lea.vmem [#allocation3], %s395
        %p397 = pneg %p50
        %p398 = pneg %p47
        %s399 = sand.u32 %s29, 1
        %s400 = scalar_lea.sflag [#allocation7], %s399
        %s401 = sand.u32 %s63, 1
        %s402 = smul.addr %s401, 512
        %s403 = scalar_lea.vmem [#allocation6], %s402
        %p404 = pneg %p76
        %p405 = pneg %p73
        %s406 = sand.u32 %s29, 1
        %s407 = scalar_lea.sflag [#allocation7], %s406
        %s408 = sand.u32 %s89, 1
        %s409 = smul.addr %s408, 4
        %s410 = scalar_lea.vmem [#allocation8], %s409
        %p411 = pneg %p102
        %p412 = pneg %p99
        %s413 = sand.u32 %s29, 1
        %s414 = scalar_lea.sflag [#allocation10], %s413
        %s415 = sand.u32 %s115, 1
        %s416 = smul.addr %s415, 256
        %s417 = scalar_lea.vmem [#allocation9], %s416
        %p418 = pneg %p128
        %p419 = pneg %p125
        %s420 = sand.u32 %s29, 1
        %s421 = scalar_lea.sflag [#allocation10], %s420
        %s422 = sand.u32 %s141, 1
        %s423 = smul.addr %s422, 4
        %s424 = scalar_lea.vmem [#allocation11], %s423
        %p425 = pneg %p154
        %p426 = pneg %p151
        %p427 = scmp.lt.s32.totalorder %s29, 1
        %s428 = scalar_select %p427, %s29, 1
        %s429 = smul.addr %s428, 8
        %s430 = scalar_lea.vmem %s5, %s429
        %p431 = pneg %p180
        %p432 = pneg %p177
        %p433 = pneg %p206
        %p434 = pneg %p203
        %s435 = sand.u32 %s193, 1
        %s436 = scalar_lea.sflag [#allocation5], %s435
        %s437 = sand.u32 %s193, 1
        %s438 = smul.addr %s437, 8
        %s439 = scalar_lea.vmem [#allocation12], %s438
        %s440 = smul.u32 4, %s29
        %s441 = smul.u32 4, %s29
        %s442 = smul.u32 4, %s29
        %s443 = smul.u32 4, %s29
        %s444 = smul.u32 4, %s29
        %p445 = scmp.lt.s32.totalorder %s29, 1
        %s446 = scalar_select %p445, %s29, 1
        %s447 = smul.addr %s446, 8
        %s448 = scalar_lea.vmem %s5, %s447
        %v450 = vld [vmem:[%s351] sm:$0xff]
        %v451 = vld [vmem:[%s351 + $0x8] sm:$0xff]
        %v452 = vld [vmem:[%s351 + $0x10] sm:$0xff]
        %v453 = vld [vmem:[%s360] sm:$0xf]
        %v454 = vld [vmem:[%s360 + $0x4] sm:$0xf]
        %v455 = vld [vmem:[%s360 + $0x8] sm:$0xf]
        %v456 = vld [vmem:[%s360 + $0xc] sm:$0xf]
        %v457 = vld [vmem:[%s360 + $0x10] sm:$0xf]
        %v458 = vld [vmem:[%s360 + $0x14] sm:$0xf]
        %v459 = vld [vmem:[%s360 + $0x18] sm:$0xf]
        %v460 = vld [vmem:[%s360 + $0x1c] sm:$0xf]
        %v461 = vld [vmem:[%s360 + $0x20] sm:$0xf]
        %v462 = vld [vmem:[%s360 + $0x24] sm:$0xf]
        %v463 = vld [vmem:[%s360 + $0x28] sm:$0xf]
        %v464 = vld [vmem:[%s360 + $0x2c] sm:$0xf]
        %v465 = vld [vmem:[%s360 + $0x30] sm:$0xf]
        %v466 = vld [vmem:[%s360 + $0x34] sm:$0xf]
        %v467 = vld [vmem:[%s360 + $0x38] sm:$0xf]
        %v468 = vld [vmem:[%s360 + $0x3c] sm:$0xf]
        %v469 = vld [vmem:[%s360 + $0x40] sm:$0xf]
        %v470 = vld [vmem:[%s360 + $0x44] sm:$0xf]
        %v471 = vld [vmem:[%s360 + $0x48] sm:$0xf]
        %v472 = vld [vmem:[%s360 + $0x4c] sm:$0xf]
        %v473 = vld [vmem:[%s360 + $0x50] sm:$0xf]
        %v474 = vld [vmem:[%s360 + $0x54] sm:$0xf]
        %v475 = vld [vmem:[%s360 + $0x58] sm:$0xf]
        %v476 = vld [vmem:[%s360 + $0x5c] sm:$0xf]
        %v477 = vld [vmem:[%s360 + $0x60] sm:$0xf]
        %v478 = vld [vmem:[%s360 + $0x64] sm:$0xf]
        %v479 = vld [vmem:[%s360 + $0x68] sm:$0xf]
        %v480 = vld [vmem:[%s360 + $0x6c] sm:$0xf]
        %v481 = vld [vmem:[%s360 + $0x70] sm:$0xf]
        %v482 = vld [vmem:[%s360 + $0x74] sm:$0xf]
        %v483 = vld [vmem:[%s360 + $0x78] sm:$0xf]
        %v484 = vld [vmem:[%s360 + $0x7c] sm:$0xf]
        %v485 = vld [vmem:[%s369] sm:$0x1]
        %v487 = vlaneseq
        %v488 = vshrl.u32 %v487, 7
        %v489 = vsub.s32 0, %v488
        %v490 = vrot.slane %v485, %v489
        %v495 = vunpack.c.l.b16 %v450
        %v496 = vunpack.c.h.b16 %v450
        %v497 = vunpack.c.l.b16 %v451
        %v498 = vunpack.c.h.b16 %v451
        %v499 = vunpack.c.l.b16 %v452
        %v500 = vunpack.c.h.b16 %v452
        %v501 = vpack.c.b16 %v497, %v495
        %v502 = vpack.c.b16 %v498, %v496
        %v503 = vpack.c.b16 %v499, %v499
        %v504 = vpack.c.b16 %v500, %v500
        %v541 = vunpack.c.l.b16 %v453
        %v542 = vunpack.c.l.b16 %v454
        %v543 = vunpack.c.l.b16 %v455
        %v544 = vunpack.c.l.b16 %v456
        %v545 = vunpack.c.l.b16 %v457
        %v546 = vunpack.c.l.b16 %v458
        %v547 = vunpack.c.l.b16 %v459
        %v548 = vunpack.c.l.b16 %v460
        %v549 = vunpack.c.l.b16 %v461
        %v550 = vunpack.c.l.b16 %v462
        %v551 = vunpack.c.l.b16 %v463
        %v552 = vunpack.c.l.b16 %v464
        %v553 = vunpack.c.l.b16 %v465
        %v554 = vunpack.c.l.b16 %v466
        %v555 = vunpack.c.l.b16 %v467
        %v556 = vunpack.c.l.b16 %v468
        %v557 = vunpack.c.l.b16 %v469
        %v558 = vunpack.c.l.b16 %v470
        %v559 = vunpack.c.l.b16 %v471
        %v560 = vunpack.c.l.b16 %v472
        %v561 = vunpack.c.l.b16 %v473
        %v562 = vunpack.c.l.b16 %v474
        %v563 = vunpack.c.l.b16 %v475
        %v564 = vunpack.c.l.b16 %v476
        %v565 = vunpack.c.l.b16 %v477
        %v566 = vunpack.c.l.b16 %v478
        %v567 = vunpack.c.l.b16 %v479
        %v568 = vunpack.c.l.b16 %v480
        %v569 = vunpack.c.l.b16 %v481
        %v570 = vunpack.c.l.b16 %v482
        %v571 = vunpack.c.l.b16 %v483
        %v572 = vunpack.c.l.b16 %v484
        %v573 = vpack.c.b16 %v542, %v541
        %v574 = vpack.c.b16 %v544, %v543
        %v575 = vpack.c.b16 %v546, %v545
        %v576 = vpack.c.b16 %v548, %v547
        %v577 = vpack.c.b16 %v550, %v549
        %v578 = vpack.c.b16 %v552, %v551
        %v579 = vpack.c.b16 %v554, %v553
        %v580 = vpack.c.b16 %v556, %v555
        %v581 = vpack.c.b16 %v558, %v557
        %v582 = vpack.c.b16 %v560, %v559
        %v583 = vpack.c.b16 %v562, %v561
        %v584 = vpack.c.b16 %v564, %v563
        %v585 = vpack.c.b16 %v566, %v565
        %v586 = vpack.c.b16 %v568, %v567
        %v587 = vpack.c.b16 %v570, %v569
        %v588 = vpack.c.b16 %v572, %v571
        %605 = vmatprep.subr.bf16.mxu0 0
        %606 = vmatpush1.bf16.msra.mxu0 %v573
        %607 = vmatprep.subr.bf16.mxu0 0
        %608 = vmatpush1.bf16.msra.mxu0 %v574
        %609 = vmatprep.subr.bf16.mxu0 0
        %610 = vmatpush1.bf16.msra.mxu0 %v575
        %611 = vmatprep.subr.bf16.mxu0 0
        %612 = vmatpush1.bf16.msra.mxu0 %v576
        %613 = vmatprep.subr.bf16.mxu0 0
        %614 = vmatpush1.bf16.msra.mxu0 %v577
        %615 = vmatprep.subr.bf16.mxu0 0
        %616 = vmatpush1.bf16.msra.mxu0 %v578
        %617 = vmatprep.subr.bf16.mxu0 0
        %618 = vmatpush1.bf16.msra.mxu0 %v579
        %619 = vmatprep.subr.bf16.mxu0 0
        %620 = vmatpush1.bf16.msra.mxu0 %v580
        %621 = vmatprep.subr.bf16.mxu0 0
        %622 = vmatpush1.bf16.msra.mxu0 %v581
        %623 = vmatprep.subr.bf16.mxu0 0
        %624 = vmatpush1.bf16.msra.mxu0 %v582
        %625 = vmatprep.subr.bf16.mxu0 0
        %626 = vmatpush1.bf16.msra.mxu0 %v583
        %627 = vmatprep.subr.bf16.mxu0 0
        %628 = vmatpush1.bf16.msra.mxu0 %v584
        %629 = vmatprep.subr.bf16.mxu0 0
        %630 = vmatpush1.bf16.msra.mxu0 %v585
        %631 = vmatprep.subr.bf16.mxu0 0
        %632 = vmatpush1.bf16.msra.mxu0 %v586
        %633 = vmatprep.subr.bf16.mxu0 0
        %634 = vmatpush1.bf16.msra.mxu0 %v587
        %635 = vmatprep.subr.bf16.mxu0 0
        %636 = vmatpush1.bf16.msra.mxu0 %v588
        %637 = vmatprep.mubr.bf16.mxu0 %v502
        %638 = vmatmul.mubr.bf16.gmra.mrb[0].mxu0 %v501
        %v639 = vpop.f32.mrb[0].mxu0
        %v640 = vadd.f32 %v490, %v639
        %v641 = vpop.f32.mrb[0].mxu0
        %v642 = vpop.f32.mrb[0].mxu0
        %v643 = vadd.f32 %v490, %v642
        %v644 = vpop.f32.mrb[0].mxu0
        %645 = vmatprep.mubr.bf16.mxu0 %v504
        %646 = vmatmul.mubr.bf16.gmra.mrb[0].mxu0 %v503
        %v647 = vpop.f32.mrb[0].mxu0
        %v648 = vadd.f32 %v490, %v647
        %v649 = vpop.f32.mrb[0].mxu0
        %v650 = vpop.f32.mrb[0].mxu0
        %v651 = vpop.f32.mrb[0].mxu0
        %652 = vdwg.mxu0
        %v653 = vmax.f32 %v640, 0.0
        %v654 = vmax.f32 %v643, 0.0
        %v655 = vmax.f32 %v648, 0.0
        %v656 = vpack.c.bf16 %v654, %v653
        %v657 = vpack.c.bf16 %v655, %v655
        %v658 = vld [vmem:[%s378] sm:$0xf]
        %v659 = vld [vmem:[%s378 + $0x4] sm:$0xf]
        %v660 = vld [vmem:[%s378 + $0x8] sm:$0xf]
        %v661 = vld [vmem:[%s378 + $0xc] sm:$0xf]
        %v662 = vld [vmem:[%s378 + $0x10] sm:$0xf]
        %v663 = vld [vmem:[%s378 + $0x14] sm:$0xf]
        %v664 = vld [vmem:[%s378 + $0x18] sm:$0xf]
        %v665 = vld [vmem:[%s378 + $0x1c] sm:$0xf]
        %v666 = vld [vmem:[%s378 + $0x20] sm:$0xf]
        %v667 = vld [vmem:[%s378 + $0x24] sm:$0xf]
        %v668 = vld [vmem:[%s378 + $0x28] sm:$0xf]
        %v669 = vld [vmem:[%s378 + $0x2c] sm:$0xf]
        %v670 = vld [vmem:[%s378 + $0x30] sm:$0xf]
        %v671 = vld [vmem:[%s378 + $0x34] sm:$0xf]
        %v672 = vld [vmem:[%s378 + $0x38] sm:$0xf]
        %v673 = vld [vmem:[%s378 + $0x3c] sm:$0xf]
        %v674 = vld [vmem:[%s387] sm:$0x1]
        %v676 = vlaneseq
        %v677 = vshrl.u32 %v676, 7
        %v678 = vsub.s32 0, %v677
        %v679 = vrot.slane %v674, %v678
        %v697 = vunpack.c.l.b16 %v658
        %v698 = vunpack.c.l.b16 %v659
        %v699 = vunpack.c.l.b16 %v660
        %v700 = vunpack.c.l.b16 %v661
        %v701 = vunpack.c.l.b16 %v662
        %v702 = vunpack.c.l.b16 %v663
        %v703 = vunpack.c.l.b16 %v664
        %v704 = vunpack.c.l.b16 %v665
        %v705 = vunpack.c.l.b16 %v666
        %v706 = vunpack.c.l.b16 %v667
        %v707 = vunpack.c.l.b16 %v668
        %v708 = vunpack.c.l.b16 %v669
        %v709 = vunpack.c.l.b16 %v670
        %v710 = vunpack.c.l.b16 %v671
        %v711 = vunpack.c.l.b16 %v672
        %v712 = vunpack.c.l.b16 %v673
        %v713 = vpack.c.b16 %v698, %v697
        %v714 = vpack.c.b16 %v700, %v699
        %v715 = vpack.c.b16 %v702, %v701
        %v716 = vpack.c.b16 %v704, %v703
        %v717 = vpack.c.b16 %v706, %v705
        %v718 = vpack.c.b16 %v708, %v707
        %v719 = vpack.c.b16 %v710, %v709
        %v720 = vpack.c.b16 %v712, %v711
        %729 = vmatprep.subr.bf16.mxu0 0
        %730 = vmatpush1.bf16.msra.mxu0 %v713
        %731 = vmatprep.subr.bf16.mxu0 0
        %732 = vmatpush1.bf16.msra.mxu0 %v714
        %733 = vmatprep.subr.bf16.mxu0 0
        %734 = vmatpush1.bf16.msra.mxu0 %v715
        %735 = vmatprep.subr.bf16.mxu0 0
        %736 = vmatpush1.bf16.msra.mxu0 %v716
        %737 = vmatprep.subr.bf16.mxu0 0
        %738 = vmatpush1.bf16.msra.mxu0 %v717
        %739 = vmatprep.subr.bf16.mxu0 0
        %740 = vmatpush1.bf16.msra.mxu0 %v718
        %741 = vmatprep.subr.bf16.mxu0 0
        %742 = vmatpush1.bf16.msra.mxu0 %v719
        %743 = vmatprep.subr.bf16.mxu0 0
        %744 = vmatpush1.bf16.msra.mxu0 %v720
        %745 = vmatprep.subr.bf16.mxu0 0
        %746 = vmatpush1.bf16.msra.mxu0 0
        %747 = vmatprep.subr.bf16.mxu0 0
        %748 = vmatpush1.bf16.msra.mxu0 0
        %749 = vmatprep.subr.bf16.mxu0 0
        %750 = vmatpush1.bf16.msra.mxu0 0
        %751 = vmatprep.subr.bf16.mxu0 0
        %752 = vmatpush1.bf16.msra.mxu0 0
        %753 = vmatprep.subr.bf16.mxu0 0
        %754 = vmatpush1.bf16.msra.mxu0 0
        %755 = vmatprep.subr.bf16.mxu0 0
        %756 = vmatpush1.bf16.msra.mxu0 0
        %757 = vmatprep.subr.bf16.mxu0 0
        %758 = vmatpush1.bf16.msra.mxu0 0
        %759 = vmatprep.subr.bf16.mxu0 0
        %760 = vmatpush1.bf16.msra.mxu0 0
        %761 = vmatprep.mubr.bf16.mxu0 0
        %762 = vmatmul.mubr.bf16.gmra.mrb[0].mxu0 %v656
        %v763 = vpop.f32.mrb[0].mxu0
        %v764 = vadd.f32 %v679, %v763
        %v765 = vpop.f32.mrb[0].mxu0
        %v766 = vpop.f32.mrb[0].mxu0
        %v767 = vadd.f32 %v679, %v766
        %v768 = vpop.f32.mrb[0].mxu0
        %769 = vmatprep.mubr.bf16.mxu0 0
        %770 = vmatmul.mubr.bf16.gmra.mrb[0].mxu0 %v657
        %v771 = vpop.f32.mrb[0].mxu0
        %v772 = vadd.f32 %v679, %v771
        %v773 = vpop.f32.mrb[0].mxu0
        %v774 = vpop.f32.mrb[0].mxu0
        %v775 = vpop.f32.mrb[0].mxu0
        %776 = vdwg.mxu0
        %v777 = vmax.f32 %v764, 0.0
        %v778 = vmax.f32 %v767, 0.0
        %v779 = vmax.f32 %v772, 0.0
        %780 = vst [vmem:[#allocation2] sm:$0xff] %v777
        %781 = vst [vmem:[#allocation2 + $0x8] sm:$0xff] %v778
        %782 = vst [vmem:[#allocation2 + $0x10] sm:$0xff] %v779
        %s783 = scalar_lea.vmem %s351, 24 [#allocation3]
        %v784 = vld [vmem:[%s783] sm:$0xff]
        %v785 = vld [vmem:[%s783 + $0x8] sm:$0xff]
        %v786 = vld [vmem:[%s783 + $0x10] sm:$0xff]
        %s787 = scalar_lea.vmem %s360, 128 [#allocation6]
        %v788 = vld [vmem:[%s787] sm:$0xf]
        %v789 = vld [vmem:[%s787 + $0x4] sm:$0xf]
        %v790 = vld [vmem:[%s787 + $0x8] sm:$0xf]
        %v791 = vld [vmem:[%s787 + $0xc] sm:$0xf]
        %v792 = vld [vmem:[%s787 + $0x10] sm:$0xf]
        %v793 = vld [vmem:[%s787 + $0x14] sm:$0xf]
        %v794 = vld [vmem:[%s787 + $0x18] sm:$0xf]
        %v795 = vld [vmem:[%s787 + $0x1c] sm:$0xf]
        %v796 = vld [vmem:[%s787 + $0x20] sm:$0xf]
        %v797 = vld [vmem:[%s787 + $0x24] sm:$0xf]
        %v798 = vld [vmem:[%s787 + $0x28] sm:$0xf]
        %v799 = vld [vmem:[%s787 + $0x2c] sm:$0xf]
        %v800 = vld [vmem:[%s787 + $0x30] sm:$0xf]
        %v801 = vld [vmem:[%s787 + $0x34] sm:$0xf]
        %v802 = vld [vmem:[%s787 + $0x38] sm:$0xf]
        %v803 = vld [vmem:[%s787 + $0x3c] sm:$0xf]
        %v804 = vld [vmem:[%s787 + $0x40] sm:$0xf]
        %v805 = vld [vmem:[%s787 + $0x44] sm:$0xf]
        %v806 = vld [vmem:[%s787 + $0x48] sm:$0xf]
        %v807 = vld [vmem:[%s787 + $0x4c] sm:$0xf]
        %v808 = vld [vmem:[%s787 + $0x50] sm:$0xf]
        %v809 = vld [vmem:[%s787 + $0x54] sm:$0xf]
        %v810 = vld [vmem:[%s787 + $0x58] sm:$0xf]
        %v811 = vld [vmem:[%s787 + $0x5c] sm:$0xf]
        %v812 = vld [vmem:[%s787 + $0x60] sm:$0xf]
        %v813 = vld [vmem:[%s787 + $0x64] sm:$0xf]
        %v814 = vld [vmem:[%s787 + $0x68] sm:$0xf]
        %v815 = vld [vmem:[%s787 + $0x6c] sm:$0xf]
        %v816 = vld [vmem:[%s787 + $0x70] sm:$0xf]
        %v817 = vld [vmem:[%s787 + $0x74] sm:$0xf]
        %v818 = vld [vmem:[%s787 + $0x78] sm:$0xf]
        %v819 = vld [vmem:[%s787 + $0x7c] sm:$0xf]
        %s820 = scalar_lea.vmem %s369, 1 [#allocation8]
        %v821 = vld [vmem:[%s820] sm:$0x1]
        %v823 = vlaneseq
        %v824 = vshrl.u32 %v823, 7
        %v825 = vsub.s32 0, %v824
        %v826 = vrot.slane %v821, %v825
        %v831 = vunpack.c.l.b16 %v784
        %v832 = vunpack.c.h.b16 %v784
        %v833 = vunpack.c.l.b16 %v785
        %v834 = vunpack.c.h.b16 %v785
        %v835 = vunpack.c.l.b16 %v786
        %v836 = vunpack.c.h.b16 %v786
        %v837 = vpack.c.b16 %v833, %v831
        %v838 = vpack.c.b16 %v834, %v832
        %v839 = vpack.c.b16 %v835, %v835
        %v840 = vpack.c.b16 %v836, %v836
        %v877 = vunpack.c.l.b16 %v788
        %v878 = vunpack.c.l.b16 %v789
        %v879 = vunpack.c.l.b16 %v790
        %v880 = vunpack.c.l.b16 %v791
        %v881 = vunpack.c.l.b16 %v792
        %v882 = vunpack.c.l.b16 %v793
        %v883 = vunpack.c.l.b16 %v794
        %v884 = vunpack.c.l.b16 %v795
        %v885 = vunpack.c.l.b16 %v796
        %v886 = vunpack.c.l.b16 %v797
        %v887 = vunpack.c.l.b16 %v798
        %v888 = vunpack.c.l.b16 %v799
        %v889 = vunpack.c.l.b16 %v800
        %v890 = vunpack.c.l.b16 %v801
        %v891 = vunpack.c.l.b16 %v802
        %v892 = vunpack.c.l.b16 %v803
        %v893 = vunpack.c.l.b16 %v804
        %v894 = vunpack.c.l.b16 %v805
        %v895 = vunpack.c.l.b16 %v806
        %v896 = vunpack.c.l.b16 %v807
        %v897 = vunpack.c.l.b16 %v808
        %v898 = vunpack.c.l.b16 %v809
        %v899 = vunpack.c.l.b16 %v810
        %v900 = vunpack.c.l.b16 %v811
        %v901 = vunpack.c.l.b16 %v812
        %v902 = vunpack.c.l.b16 %v813
        %v903 = vunpack.c.l.b16 %v814
        %v904 = vunpack.c.l.b16 %v815
        %v905 = vunpack.c.l.b16 %v816
        %v906 = vunpack.c.l.b16 %v817
        %v907 = vunpack.c.l.b16 %v818
        %v908 = vunpack.c.l.b16 %v819
        %v909 = vpack.c.b16 %v878, %v877
        %v910 = vpack.c.b16 %v880, %v879
        %v911 = vpack.c.b16 %v882, %v881
        %v912 = vpack.c.b16 %v884, %v883
        %v913 = vpack.c.b16 %v886, %v885
        %v914 = vpack.c.b16 %v888, %v887
        %v915 = vpack.c.b16 %v890, %v889
        %v916 = vpack.c.b16 %v892, %v891
        %v917 = vpack.c.b16 %v894, %v893
        %v918 = vpack.c.b16 %v896, %v895
        %v919 = vpack.c.b16 %v898, %v897
        %v920 = vpack.c.b16 %v900, %v899
        %v921 = vpack.c.b16 %v902, %v901
        %v922 = vpack.c.b16 %v904, %v903
        %v923 = vpack.c.b16 %v906, %v905
        %v924 = vpack.c.b16 %v908, %v907
        %941 = vmatprep.subr.bf16.mxu0 0
        %942 = vmatpush1.bf16.msra.mxu0 %v909
        %943 = vmatprep.subr.bf16.mxu0 0
        %944 = vmatpush1.bf16.msra.mxu0 %v910
        %945 = vmatprep.subr.bf16.mxu0 0
        %946 = vmatpush1.bf16.msra.mxu0 %v911
        %947 = vmatprep.subr.bf16.mxu0 0
        %948 = vmatpush1.bf16.msra.mxu0 %v912
        %949 = vmatprep.subr.bf16.mxu0 0
        %950 = vmatpush1.bf16.msra.mxu0 %v913
        %951 = vmatprep.subr.bf16.mxu0 0
        %952 = vmatpush1.bf16.msra.mxu0 %v914
        %953 = vmatprep.subr.bf16.mxu0 0
        %954 = vmatpush1.bf16.msra.mxu0 %v915
        %955 = vmatprep.subr.bf16.mxu0 0
        %956 = vmatpush1.bf16.msra.mxu0 %v916
        %957 = vmatprep.subr.bf16.mxu0 0
        %958 = vmatpush1.bf16.msra.mxu0 %v917
        %959 = vmatprep.subr.bf16.mxu0 0
        %960 = vmatpush1.bf16.msra.mxu0 %v918
        %961 = vmatprep.subr.bf16.mxu0 0
        %962 = vmatpush1.bf16.msra.mxu0 %v919
        %963 = vmatprep.subr.bf16.mxu0 0
        %964 = vmatpush1.bf16.msra.mxu0 %v920
        %965 = vmatprep.subr.bf16.mxu0 0
        %966 = vmatpush1.bf16.msra.mxu0 %v921
        %967 = vmatprep.subr.bf16.mxu0 0
        %968 = vmatpush1.bf16.msra.mxu0 %v922
        %969 = vmatprep.subr.bf16.mxu0 0
        %970 = vmatpush1.bf16.msra.mxu0 %v923
        %971 = vmatprep.subr.bf16.mxu0 0
        %972 = vmatpush1.bf16.msra.mxu0 %v924
        %973 = vmatprep.mubr.bf16.mxu0 %v838
        %974 = vmatmul.mubr.bf16.gmra.mrb[0].mxu0 %v837
        %v975 = vpop.f32.mrb[0].mxu0
        %v976 = vadd.f32 %v826, %v975
        %v977 = vpop.f32.mrb[0].mxu0
        %v978 = vpop.f32.mrb[0].mxu0
        %v979 = vadd.f32 %v826, %v978
        %v980 = vpop.f32.mrb[0].mxu0
        %981 = vmatprep.mubr.bf16.mxu0 %v840
        %982 = vmatmul.mubr.bf16.gmra.mrb[0].mxu0 %v839
        %v983 = vpop.f32.mrb[0].mxu0
        %v984 = vadd.f32 %v826, %v983
        %v985 = vpop.f32.mrb[0].mxu0
        %v986 = vpop.f32.mrb[0].mxu0
        %v987 = vpop.f32.mrb[0].mxu0
        %988 = vdwg.mxu0
        %v989 = vmax.f32 %v976, 0.0
        %v990 = vmax.f32 %v979, 0.0
        %v991 = vmax.f32 %v984, 0.0
        %v992 = vpack.c.bf16 %v990, %v989
        %v993 = vpack.c.bf16 %v991, %v991
        %s994 = scalar_lea.vmem %s378, 64 [#allocation9]
        %v995 = vld [vmem:[%s994] sm:$0xf]
        %v996 = vld [vmem:[%s994 + $0x4] sm:$0xf]
        %v997 = vld [vmem:[%s994 + $0x8] sm:$0xf]
        %v998 = vld [vmem:[%s994 + $0xc] sm:$0xf]
        %v999 = vld [vmem:[%s994 + $0x10] sm:$0xf]
        %v1000 = vld [vmem:[%s994 + $0x14] sm:$0xf]
        %v1001 = vld [vmem:[%s994 + $0x18] sm:$0xf]
        %v1002 = vld [vmem:[%s994 + $0x1c] sm:$0xf]
        %v1003 = vld [vmem:[%s994 + $0x20] sm:$0xf]
        %v1004 = vld [vmem:[%s994 + $0x24] sm:$0xf]
        %v1005 = vld [vmem:[%s994 + $0x28] sm:$0xf]
        %v1006 = vld [vmem:[%s994 + $0x2c] sm:$0xf]
        %v1007 = vld [vmem:[%s994 + $0x30] sm:$0xf]
        %v1008 = vld [vmem:[%s994 + $0x34] sm:$0xf]
        %v1009 = vld [vmem:[%s994 + $0x38] sm:$0xf]
        %v1010 = vld [vmem:[%s994 + $0x3c] sm:$0xf]
        %s1011 = scalar_lea.vmem %s387, 1 [#allocation11]
        %v1012 = vld [vmem:[%s1011] sm:$0x1]
        %v1014 = vlaneseq
        %v1015 = vshrl.u32 %v1014, 7
        %v1016 = vsub.s32 0, %v1015
        %v1017 = vrot.slane %v1012, %v1016
        %v1035 = vunpack.c.l.b16 %v995
        %v1036 = vunpack.c.l.b16 %v996
        %v1037 = vunpack.c.l.b16 %v997
        %v1038 = vunpack.c.l.b16 %v998
        %v1039 = vunpack.c.l.b16 %v999
        %v1040 = vunpack.c.l.b16 %v1000
        %v1041 = vunpack.c.l.b16 %v1001
        %v1042 = vunpack.c.l.b16 %v1002
        %v1043 = vunpack.c.l.b16 %v1003
        %v1044 = vunpack.c.l.b16 %v1004
        %v1045 = vunpack.c.l.b16 %v1005
        %v1046 = vunpack.c.l.b16 %v1006
        %v1047 = vunpack.c.l.b16 %v1007
        %v1048 = vunpack.c.l.b16 %v1008
        %v1049 = vunpack.c.l.b16 %v1009
        %v1050 = vunpack.c.l.b16 %v1010
        %v1051 = vpack.c.b16 %v1036, %v1035
        %v1052 = vpack.c.b16 %v1038, %v1037
        %v1053 = vpack.c.b16 %v1040, %v1039
        %v1054 = vpack.c.b16 %v1042, %v1041
        %v1055 = vpack.c.b16 %v1044, %v1043
        %v1056 = vpack.c.b16 %v1046, %v1045
        %v1057 = vpack.c.b16 %v1048, %v1047
        %v1058 = vpack.c.b16 %v1050, %v1049
        %1067 = vmatprep.subr.bf16.mxu0 0
        %1068 = vmatpush1.bf16.msra.mxu0 %v1051
        %1069 = vmatprep.subr.bf16.mxu0 0
        %1070 = vmatpush1.bf16.msra.mxu0 %v1052
        %1071 = vmatprep.subr.bf16.mxu0 0
        %1072 = vmatpush1.bf16.msra.mxu0 %v1053
        %1073 = vmatprep.subr.bf16.mxu0 0
        %1074 = vmatpush1.bf16.msra.mxu0 %v1054
        %1075 = vmatprep.subr.bf16.mxu0 0
        %1076 = vmatpush1.bf16.msra.mxu0 %v1055
        %1077 = vmatprep.subr.bf16.mxu0 0
        %1078 = vmatpush1.bf16.msra.mxu0 %v1056
        %1079 = vmatprep.subr.bf16.mxu0 0
        %1080 = vmatpush1.bf16.msra.mxu0 %v1057
        %1081 = vmatprep.subr.bf16.mxu0 0
        %1082 = vmatpush1.bf16.msra.mxu0 %v1058
        %1083 = vmatprep.subr.bf16.mxu0 0
        %1084 = vmatpush1.bf16.msra.mxu0 0
        %1085 = vmatprep.subr.bf16.mxu0 0
        %1086 = vmatpush1.bf16.msra.mxu0 0
        %1087 = vmatprep.subr.bf16.mxu0 0
        %1088 = vmatpush1.bf16.msra.mxu0 0
        %1089 = vmatprep.subr.bf16.mxu0 0
        %1090 = vmatpush1.bf16.msra.mxu0 0
        %1091 = vmatprep.subr.bf16.mxu0 0
        %1092 = vmatpush1.bf16.msra.mxu0 0
        %1093 = vmatprep.subr.bf16.mxu0 0
        %1094 = vmatpush1.bf16.msra.mxu0 0
        %1095 = vmatprep.subr.bf16.mxu0 0
        %1096 = vmatpush1.bf16.msra.mxu0 0
        %1097 = vmatprep.subr.bf16.mxu0 0
        %1098 = vmatpush1.bf16.msra.mxu0 0
        %1099 = vmatprep.mubr.bf16.mxu0 0
        %1100 = vmatmul.mubr.bf16.gmra.mrb[0].mxu0 %v992
        %v1101 = vpop.f32.mrb[0].mxu0
        %v1102 = vadd.f32 %v1017, %v1101
        %v1103 = vpop.f32.mrb[0].mxu0
        %v1104 = vpop.f32.mrb[0].mxu0
        %v1105 = vadd.f32 %v1017, %v1104
        %v1106 = vpop.f32.mrb[0].mxu0
        %1107 = vmatprep.mubr.bf16.mxu0 0
        %1108 = vmatmul.mubr.bf16.gmra.mrb[0].mxu0 %v993
        %v1109 = vpop.f32.mrb[0].mxu0
        %v1110 = vadd.f32 %v1017, %v1109
        %v1111 = vpop.f32.mrb[0].mxu0
        %v1112 = vpop.f32.mrb[0].mxu0
        %v1113 = vpop.f32.mrb[0].mxu0
        %1114 = vdwg.mxu0
        %v1115 = vmax.f32 %v1102, 0.0
        %v1116 = vmax.f32 %v1105, 0.0
        %v1117 = vmax.f32 %v1110, 0.0
        %1118 = vst [vmem:[#allocation2 + $0x18] sm:$0xff] %v1115
        %1119 = vst [vmem:[#allocation2 + $0x20] sm:$0xff] %v1116
        %1120 = vst [vmem:[#allocation2 + $0x28] sm:$0xff] %v1117
        %s1121 = scalar_lea.vmem %s351, 48 [#allocation3]
        %v1122 = vld [vmem:[%s1121] sm:$0xff]
        %v1123 = vld [vmem:[%s1121 + $0x8] sm:$0xff]
        %v1124 = vld [vmem:[%s1121 + $0x10] sm:$0xff]
        %s1125 = scalar_lea.vmem %s360, 256 [#allocation6]
        %v1126 = vld [vmem:[%s1125] sm:$0xf]
        %v1127 = vld [vmem:[%s1125 + $0x4] sm:$0xf]
        %v1128 = vld [vmem:[%s1125 + $0x8] sm:$0xf]
        %v1129 = vld [vmem:[%s1125 + $0xc] sm:$0xf]
        %v1130 = vld [vmem:[%s1125 + $0x10] sm:$0xf]
        %v1131 = vld [vmem:[%s1125 + $0x14] sm:$0xf]
        %v1132 = vld [vmem:[%s1125 + $0x18] sm:$0xf]
        %v1133 = vld [vmem:[%s1125 + $0x1c] sm:$0xf]
        %v1134 = vld [vmem:[%s1125 + $0x20] sm:$0xf]
        %v1135 = vld [vmem:[%s1125 + $0x24] sm:$0xf]
        %v1136 = vld [vmem:[%s1125 + $0x28] sm:$0xf]
        %v1137 = vld [vmem:[%s1125 + $0x2c] sm:$0xf]
        %v1138 = vld [vmem:[%s1125 + $0x30] sm:$0xf]
        %v1139 = vld [vmem:[%s1125 + $0x34] sm:$0xf]
        %v1140 = vld [vmem:[%s1125 + $0x38] sm:$0xf]
        %v1141 = vld [vmem:[%s1125 + $0x3c] sm:$0xf]
        %v1142 = vld [vmem:[%s1125 + $0x40] sm:$0xf]
        %v1143 = vld [vmem:[%s1125 + $0x44] sm:$0xf]
        %v1144 = vld [vmem:[%s1125 + $0x48] sm:$0xf]
        %v1145 = vld [vmem:[%s1125 + $0x4c] sm:$0xf]
        %v1146 = vld [vmem:[%s1125 + $0x50] sm:$0xf]
        %v1147 = vld [vmem:[%s1125 + $0x54] sm:$0xf]
        %v1148 = vld [vmem:[%s1125 + $0x58] sm:$0xf]
        %v1149 = vld [vmem:[%s1125 + $0x5c] sm:$0xf]
        %v1150 = vld [vmem:[%s1125 + $0x60] sm:$0xf]
        %v1151 = vld [vmem:[%s1125 + $0x64] sm:$0xf]
        %v1152 = vld [vmem:[%s1125 + $0x68] sm:$0xf]
        %v1153 = vld [vmem:[%s1125 + $0x6c] sm:$0xf]
        %v1154 = vld [vmem:[%s1125 + $0x70] sm:$0xf]
        %v1155 = vld [vmem:[%s1125 + $0x74] sm:$0xf]
        %v1156 = vld [vmem:[%s1125 + $0x78] sm:$0xf]
        %v1157 = vld [vmem:[%s1125 + $0x7c] sm:$0xf]
        %s1158 = scalar_lea.vmem %s369, 2 [#allocation8]
        %v1159 = vld [vmem:[%s1158] sm:$0x1]
        %v1161 = vlaneseq
        %v1162 = vshrl.u32 %v1161, 7
        %v1163 = vsub.s32 0, %v1162
        %v1164 = vrot.slane %v1159, %v1163
        %v1169 = vunpack.c.l.b16 %v1122
        %v1170 = vunpack.c.h.b16 %v1122
        %v1171 = vunpack.c.l.b16 %v1123
        %v1172 = vunpack.c.h.b16 %v1123
        %v1173 = vunpack.c.l.b16 %v1124
        %v1174 = vunpack.c.h.b16 %v1124
        %v1175 = vpack.c.b16 %v1171, %v1169
        %v1176 = vpack.c.b16 %v1172, %v1170
        %v1177 = vpack.c.b16 %v1173, %v1173
        %v1178 = vpack.c.b16 %v1174, %v1174
        %v1215 = vunpack.c.l.b16 %v1126
        %v1216 = vunpack.c.l.b16 %v1127
        %v1217 = vunpack.c.l.b16 %v1128
        %v1218 = vunpack.c.l.b16 %v1129
        %v1219 = vunpack.c.l.b16 %v1130
        %v1220 = vunpack.c.l.b16 %v1131
        %v1221 = vunpack.c.l.b16 %v1132
        %v1222 = vunpack.c.l.b16 %v1133
        %v1223 = vunpack.c.l.b16 %v1134
        %v1224 = vunpack.c.l.b16 %v1135
        %v1225 = vunpack.c.l.b16 %v1136
        %v1226 = vunpack.c.l.b16 %v1137
        %v1227 = vunpack.c.l.b16 %v1138
        %v1228 = vunpack.c.l.b16 %v1139
        %v1229 = vunpack.c.l.b16 %v1140
        %v1230 = vunpack.c.l.b16 %v1141
        %v1231 = vunpack.c.l.b16 %v1142
        %v1232 = vunpack.c.l.b16 %v1143
        %v1233 = vunpack.c.l.b16 %v1144
        %v1234 = vunpack.c.l.b16 %v1145
        %v1235 = vunpack.c.l.b16 %v1146
        %v1236 = vunpack.c.l.b16 %v1147
        %v1237 = vunpack.c.l.b16 %v1148
        %v1238 = vunpack.c.l.b16 %v1149
        %v1239 = vunpack.c.l.b16 %v1150
        %v1240 = vunpack.c.l.b16 %v1151
        %v1241 = vunpack.c.l.b16 %v1152
        %v1242 = vunpack.c.l.b16 %v1153
        %v1243 = vunpack.c.l.b16 %v1154
        %v1244 = vunpack.c.l.b16 %v1155
        %v1245 = vunpack.c.l.b16 %v1156
        %v1246 = vunpack.c.l.b16 %v1157
        %v1247 = vpack.c.b16 %v1216, %v1215
        %v1248 = vpack.c.b16 %v1218, %v1217
        %v1249 = vpack.c.b16 %v1220, %v1219
        %v1250 = vpack.c.b16 %v1222, %v1221
        %v1251 = vpack.c.b16 %v1224, %v1223
        %v1252 = vpack.c.b16 %v1226, %v1225
        %v1253 = vpack.c.b16 %v1228, %v1227
        %v1254 = vpack.c.b16 %v1230, %v1229
        %v1255 = vpack.c.b16 %v1232, %v1231
        %v1256 = vpack.c.b16 %v1234, %v1233
        %v1257 = vpack.c.b16 %v1236, %v1235
        %v1258 = vpack.c.b16 %v1238, %v1237
        %v1259 = vpack.c.b16 %v1240, %v1239
        %v1260 = vpack.c.b16 %v1242, %v1241
        %v1261 = vpack.c.b16 %v1244, %v1243
        %v1262 = vpack.c.b16 %v1246, %v1245
        %1279 = vmatprep.subr.bf16.mxu0 0
        %1280 = vmatpush1.bf16.msra.mxu0 %v1247
        %1281 = vmatprep.subr.bf16.mxu0 0
        %1282 = vmatpush1.bf16.msra.mxu0 %v1248
        %1283 = vmatprep.subr.bf16.mxu0 0
        %1284 = vmatpush1.bf16.msra.mxu0 %v1249
        %1285 = vmatprep.subr.bf16.mxu0 0
        %1286 = vmatpush1.bf16.msra.mxu0 %v1250
        %1287 = vmatprep.subr.bf16.mxu0 0
        %1288 = vmatpush1.bf16.msra.mxu0 %v1251
        %1289 = vmatprep.subr.bf16.mxu0 0
        %1290 = vmatpush1.bf16.msra.mxu0 %v1252
        %1291 = vmatprep.subr.bf16.mxu0 0
        %1292 = vmatpush1.bf16.msra.mxu0 %v1253
        %1293 = vmatprep.subr.bf16.mxu0 0
        %1294 = vmatpush1.bf16.msra.mxu0 %v1254
        %1295 = vmatprep.subr.bf16.mxu0 0
        %1296 = vmatpush1.bf16.msra.mxu0 %v1255
        %1297 = vmatprep.subr.bf16.mxu0 0
        %1298 = vmatpush1.bf16.msra.mxu0 %v1256
        %1299 = vmatprep.subr.bf16.mxu0 0
        %1300 = vmatpush1.bf16.msra.mxu0 %v1257
        %1301 = vmatprep.subr.bf16.mxu0 0
        %1302 = vmatpush1.bf16.msra.mxu0 %v1258
        %1303 = vmatprep.subr.bf16.mxu0 0
        %1304 = vmatpush1.bf16.msra.mxu0 %v1259
        %1305 = vmatprep.subr.bf16.mxu0 0
        %1306 = vmatpush1.bf16.msra.mxu0 %v1260
        %1307 = vmatprep.subr.bf16.mxu0 0
        %1308 = vmatpush1.bf16.msra.mxu0 %v1261
        %1309 = vmatprep.subr.bf16.mxu0 0
        %1310 = vmatpush1.bf16.msra.mxu0 %v1262
        %1311 = vmatprep.mubr.bf16.mxu0 %v1176
        %1312 = vmatmul.mubr.bf16.gmra.mrb[0].mxu0 %v1175
        %v1313 = vpop.f32.mrb[0].mxu0
        %v1314 = vadd.f32 %v1164, %v1313
        %v1315 = vpop.f32.mrb[0].mxu0
        %v1316 = vpop.f32.mrb[0].mxu0
        %v1317 = vadd.f32 %v1164, %v1316
        %v1318 = vpop.f32.mrb[0].mxu0
        %1319 = vmatprep.mubr.bf16.mxu0 %v1178
        %1320 = vmatmul.mubr.bf16.gmra.mrb[0].mxu0 %v1177
        %v1321 = vpop.f32.mrb[0].mxu0
        %v1322 = vadd.f32 %v1164, %v1321
        %v1323 = vpop.f32.mrb[0].mxu0
        %v1324 = vpop.f32.mrb[0].mxu0
        %v1325 = vpop.f32.mrb[0].mxu0
        %1326 = vdwg.mxu0
        %v1327 = vmax.f32 %v1314, 0.0
        %v1328 = vmax.f32 %v1317, 0.0
        %v1329 = vmax.f32 %v1322, 0.0
        %v1330 = vpack.c.bf16 %v1328, %v1327
        %v1331 = vpack.c.bf16 %v1329, %v1329
        %s1332 = scalar_lea.vmem %s378, 128 [#allocation9]
        %v1333 = vld [vmem:[%s1332] sm:$0xf]
        %v1334 = vld [vmem:[%s1332 + $0x4] sm:$0xf]
        %v1335 = vld [vmem:[%s1332 + $0x8] sm:$0xf]
        %v1336 = vld [vmem:[%s1332 + $0xc] sm:$0xf]
        %v1337 = vld [vmem:[%s1332 + $0x10] sm:$0xf]
        %v1338 = vld [vmem:[%s1332 + $0x14] sm:$0xf]
        %v1339 = vld [vmem:[%s1332 + $0x18] sm:$0xf]
        %v1340 = vld [vmem:[%s1332 + $0x1c] sm:$0xf]
        %v1341 = vld [vmem:[%s1332 + $0x20] sm:$0xf]
        %v1342 = vld [vmem:[%s1332 + $0x24] sm:$0xf]
        %v1343 = vld [vmem:[%s1332 + $0x28] sm:$0xf]
        %v1344 = vld [vmem:[%s1332 + $0x2c] sm:$0xf]
        %v1345 = vld [vmem:[%s1332 + $0x30] sm:$0xf]
        %v1346 = vld [vmem:[%s1332 + $0x34] sm:$0xf]
        %v1347 = vld [vmem:[%s1332 + $0x38] sm:$0xf]
        %v1348 = vld [vmem:[%s1332 + $0x3c] sm:$0xf]
        %s1349 = scalar_lea.vmem %s387, 2 [#allocation11]
        %v1350 = vld [vmem:[%s1349] sm:$0x1]
        %v1352 = vlaneseq
        %v1353 = vshrl.u32 %v1352, 7
        %v1354 = vsub.s32 0, %v1353
        %v1355 = vrot.slane %v1350, %v1354
        %v1373 = vunpack.c.l.b16 %v1333
        %v1374 = vunpack.c.l.b16 %v1334
        %v1375 = vunpack.c.l.b16 %v1335
        %v1376 = vunpack.c.l.b16 %v1336
        %v1377 = vunpack.c.l.b16 %v1337
        %v1378 = vunpack.c.l.b16 %v1338
        %v1379 = vunpack.c.l.b16 %v1339
        %v1380 = vunpack.c.l.b16 %v1340
        %v1381 = vunpack.c.l.b16 %v1341
        %v1382 = vunpack.c.l.b16 %v1342
        %v1383 = vunpack.c.l.b16 %v1343
        %v1384 = vunpack.c.l.b16 %v1344
        %v1385 = vunpack.c.l.b16 %v1345
        %v1386 = vunpack.c.l.b16 %v1346
        %v1387 = vunpack.c.l.b16 %v1347
        %v1388 = vunpack.c.l.b16 %v1348
        %v1389 = vpack.c.b16 %v1374, %v1373
        %v1390 = vpack.c.b16 %v1376, %v1375
        %v1391 = vpack.c.b16 %v1378, %v1377
        %v1392 = vpack.c.b16 %v1380, %v1379
        %v1393 = vpack.c.b16 %v1382, %v1381
        %v1394 = vpack.c.b16 %v1384, %v1383
        %v1395 = vpack.c.b16 %v1386, %v1385
        %v1396 = vpack.c.b16 %v1388, %v1387
        %1405 = vmatprep.subr.bf16.mxu0 0
        %1406 = vmatpush1.bf16.msra.mxu0 %v1389
        %1407 = vmatprep.subr.bf16.mxu0 0
        %1408 = vmatpush1.bf16.msra.mxu0 %v1390
        %1409 = vmatprep.subr.bf16.mxu0 0
        %1410 = vmatpush1.bf16.msra.mxu0 %v1391
        %1411 = vmatprep.subr.bf16.mxu0 0
        %1412 = vmatpush1.bf16.msra.mxu0 %v1392
        %1413 = vmatprep.subr.bf16.mxu0 0
        %1414 = vmatpush1.bf16.msra.mxu0 %v1393
        %1415 = vmatprep.subr.bf16.mxu0 0
        %1416 = vmatpush1.bf16.msra.mxu0 %v1394
        %1417 = vmatprep.subr.bf16.mxu0 0
        %1418 = vmatpush1.bf16.msra.mxu0 %v1395
        %1419 = vmatprep.subr.bf16.mxu0 0
        %1420 = vmatpush1.bf16.msra.mxu0 %v1396
        %1421 = vmatprep.subr.bf16.mxu0 0
        %1422 = vmatpush1.bf16.msra.mxu0 0
        %1423 = vmatprep.subr.bf16.mxu0 0
        %1424 = vmatpush1.bf16.msra.mxu0 0
        %1425 = vmatprep.subr.bf16.mxu0 0
        %1426 = vmatpush1.bf16.msra.mxu0 0
        %1427 = vmatprep.subr.bf16.mxu0 0
        %1428 = vmatpush1.bf16.msra.mxu0 0
        %1429 = vmatprep.subr.bf16.mxu0 0
        %1430 = vmatpush1.bf16.msra.mxu0 0
        %1431 = vmatprep.subr.bf16.mxu0 0
        %1432 = vmatpush1.bf16.msra.mxu0 0
        %1433 = vmatprep.subr.bf16.mxu0 0
        %1434 = vmatpush1.bf16.msra.mxu0 0
        %1435 = vmatprep.subr.bf16.mxu0 0
        %1436 = vmatpush1.bf16.msra.mxu0 0
        %1437 = vmatprep.mubr.bf16.mxu0 0
        %1438 = vmatmul.mubr.bf16.gmra.mrb[0].mxu0 %v1330
        %v1439 = vpop.f32.mrb[0].mxu0
        %v1440 = vadd.f32 %v1355, %v1439
        %v1441 = vpop.f32.mrb[0].mxu0
        %v1442 = vpop.f32.mrb[0].mxu0
        %v1443 = vadd.f32 %v1355, %v1442
        %v1444 = vpop.f32.mrb[0].mxu0
        %1445 = vmatprep.mubr.bf16.mxu0 0
        %1446 = vmatmul.mubr.bf16.gmra.mrb[0].mxu0 %v1331
        %v1447 = vpop.f32.mrb[0].mxu0
        %v1448 = vadd.f32 %v1355, %v1447
        %v1449 = vpop.f32.mrb[0].mxu0
        %v1450 = vpop.f32.mrb[0].mxu0
        %v1451 = vpop.f32.mrb[0].mxu0
        %1452 = vdwg.mxu0
        %v1453 = vmax.f32 %v1440, 0.0
        %v1454 = vmax.f32 %v1443, 0.0
        %v1455 = vmax.f32 %v1448, 0.0
        %1456 = vst [vmem:[#allocation2 + $0x30] sm:$0xff] %v1453
        %1457 = vst [vmem:[#allocation2 + $0x38] sm:$0xff] %v1454
        %1458 = vst [vmem:[#allocation2 + $0x40] sm:$0xff] %v1455
        %s1459 = scalar_lea.vmem %s351, 72 [#allocation3]
        %v1460 = vld [vmem:[%s1459] sm:$0xff]
        %v1461 = vld [vmem:[%s1459 + $0x8] sm:$0xff]
        %v1462 = vld [vmem:[%s1459 + $0x10] sm:$0xff]
        %s1463 = scalar_lea.vmem %s360, 384 [#allocation6]
        %v1464 = vld [vmem:[%s1463] sm:$0xf]
        %v1465 = vld [vmem:[%s1463 + $0x4] sm:$0xf]
        %v1466 = vld [vmem:[%s1463 + $0x8] sm:$0xf]
        %v1467 = vld [vmem:[%s1463 + $0xc] sm:$0xf]
        %v1468 = vld [vmem:[%s1463 + $0x10] sm:$0xf]
        %v1469 = vld [vmem:[%s1463 + $0x14] sm:$0xf]
        %v1470 = vld [vmem:[%s1463 + $0x18] sm:$0xf]
        %v1471 = vld [vmem:[%s1463 + $0x1c] sm:$0xf]
        %v1472 = vld [vmem:[%s1463 + $0x20] sm:$0xf]
        %v1473 = vld [vmem:[%s1463 + $0x24] sm:$0xf]
        %v1474 = vld [vmem:[%s1463 + $0x28] sm:$0xf]
        %v1475 = vld [vmem:[%s1463 + $0x2c] sm:$0xf]
        %v1476 = vld [vmem:[%s1463 + $0x30] sm:$0xf]
        %v1477 = vld [vmem:[%s1463 + $0x34] sm:$0xf]
        %v1478 = vld [vmem:[%s1463 + $0x38] sm:$0xf]
        %v1479 = vld [vmem:[%s1463 + $0x3c] sm:$0xf]
        %v1480 = vld [vmem:[%s1463 + $0x40] sm:$0xf]
        %v1481 = vld [vmem:[%s1463 + $0x44] sm:$0xf]
        %v1482 = vld [vmem:[%s1463 + $0x48] sm:$0xf]
        %v1483 = vld [vmem:[%s1463 + $0x4c] sm:$0xf]
        %v1484 = vld [vmem:[%s1463 + $0x50] sm:$0xf]
        %v1485 = vld [vmem:[%s1463 + $0x54] sm:$0xf]
        %v1486 = vld [vmem:[%s1463 + $0x58] sm:$0xf]
        %v1487 = vld [vmem:[%s1463 + $0x5c] sm:$0xf]
        %v1488 = vld [vmem:[%s1463 + $0x60] sm:$0xf]
        %v1489 = vld [vmem:[%s1463 + $0x64] sm:$0xf]
        %v1490 = vld [vmem:[%s1463 + $0x68] sm:$0xf]
        %v1491 = vld [vmem:[%s1463 + $0x6c] sm:$0xf]
        %v1492 = vld [vmem:[%s1463 + $0x70] sm:$0xf]
        %v1493 = vld [vmem:[%s1463 + $0x74] sm:$0xf]
        %v1494 = vld [vmem:[%s1463 + $0x78] sm:$0xf]
        %v1495 = vld [vmem:[%s1463 + $0x7c] sm:$0xf]
        %s1496 = scalar_lea.vmem %s369, 3 [#allocation8]
        %v1497 = vld [vmem:[%s1496] sm:$0x1]
        %v1499 = vlaneseq
        %v1500 = vshrl.u32 %v1499, 7
        %v1501 = vsub.s32 0, %v1500
        %v1502 = vrot.slane %v1497, %v1501
        %v1507 = vunpack.c.l.b16 %v1460
        %v1508 = vunpack.c.h.b16 %v1460
        %v1509 = vunpack.c.l.b16 %v1461
        %v1510 = vunpack.c.h.b16 %v1461
        %v1511 = vunpack.c.l.b16 %v1462
        %v1512 = vunpack.c.h.b16 %v1462
        %v1513 = vpack.c.b16 %v1509, %v1507
        %v1514 = vpack.c.b16 %v1510, %v1508
        %v1515 = vpack.c.b16 %v1511, %v1511
        %v1516 = vpack.c.b16 %v1512, %v1512
        %v1553 = vunpack.c.l.b16 %v1464
        %v1554 = vunpack.c.l.b16 %v1465
        %v1555 = vunpack.c.l.b16 %v1466
        %v1556 = vunpack.c.l.b16 %v1467
        %v1557 = vunpack.c.l.b16 %v1468
        %v1558 = vunpack.c.l.b16 %v1469
        %v1559 = vunpack.c.l.b16 %v1470
        %v1560 = vunpack.c.l.b16 %v1471
        %v1561 = vunpack.c.l.b16 %v1472
        %v1562 = vunpack.c.l.b16 %v1473
        %v1563 = vunpack.c.l.b16 %v1474
        %v1564 = vunpack.c.l.b16 %v1475
        %v1565 = vunpack.c.l.b16 %v1476
        %v1566 = vunpack.c.l.b16 %v1477
        %v1567 = vunpack.c.l.b16 %v1478
        %v1568 = vunpack.c.l.b16 %v1479
        %v1569 = vunpack.c.l.b16 %v1480
        %v1570 = vunpack.c.l.b16 %v1481
        %v1571 = vunpack.c.l.b16 %v1482
        %v1572 = vunpack.c.l.b16 %v1483
        %v1573 = vunpack.c.l.b16 %v1484
        %v1574 = vunpack.c.l.b16 %v1485
        %v1575 = vunpack.c.l.b16 %v1486
        %v1576 = vunpack.c.l.b16 %v1487
        %v1577 = vunpack.c.l.b16 %v1488
        %v1578 = vunpack.c.l.b16 %v1489
        %v1579 = vunpack.c.l.b16 %v1490
        %v1580 = vunpack.c.l.b16 %v1491
        %v1581 = vunpack.c.l.b16 %v1492
        %v1582 = vunpack.c.l.b16 %v1493
        %v1583 = vunpack.c.l.b16 %v1494
        %v1584 = vunpack.c.l.b16 %v1495
        %v1585 = vpack.c.b16 %v1554, %v1553
        %v1586 = vpack.c.b16 %v1556, %v1555
        %v1587 = vpack.c.b16 %v1558, %v1557
        %v1588 = vpack.c.b16 %v1560, %v1559
        %v1589 = vpack.c.b16 %v1562, %v1561
        %v1590 = vpack.c.b16 %v1564, %v1563
        %v1591 = vpack.c.b16 %v1566, %v1565
        %v1592 = vpack.c.b16 %v1568, %v1567
        %v1593 = vpack.c.b16 %v1570, %v1569
        %v1594 = vpack.c.b16 %v1572, %v1571
        %v1595 = vpack.c.b16 %v1574, %v1573
        %v1596 = vpack.c.b16 %v1576, %v1575
        %v1597 = vpack.c.b16 %v1578, %v1577
        %v1598 = vpack.c.b16 %v1580, %v1579
        %v1599 = vpack.c.b16 %v1582, %v1581
        %v1600 = vpack.c.b16 %v1584, %v1583
        %1617 = vmatprep.subr.bf16.mxu0 0
        %1618 = vmatpush1.bf16.msra.mxu0 %v1585
        %1619 = vmatprep.subr.bf16.mxu0 0
        %1620 = vmatpush1.bf16.msra.mxu0 %v1586
        %1621 = vmatprep.subr.bf16.mxu0 0
        %1622 = vmatpush1.bf16.msra.mxu0 %v1587
        %1623 = vmatprep.subr.bf16.mxu0 0
        %1624 = vmatpush1.bf16.msra.mxu0 %v1588
        %1625 = vmatprep.subr.bf16.mxu0 0
        %1626 = vmatpush1.bf16.msra.mxu0 %v1589
        %1627 = vmatprep.subr.bf16.mxu0 0
        %1628 = vmatpush1.bf16.msra.mxu0 %v1590
        %1629 = vmatprep.subr.bf16.mxu0 0
        %1630 = vmatpush1.bf16.msra.mxu0 %v1591
        %1631 = vmatprep.subr.bf16.mxu0 0
        %1632 = vmatpush1.bf16.msra.mxu0 %v1592
        %1633 = vmatprep.subr.bf16.mxu0 0
        %1634 = vmatpush1.bf16.msra.mxu0 %v1593
        %1635 = vmatprep.subr.bf16.mxu0 0
        %1636 = vmatpush1.bf16.msra.mxu0 %v1594
        %1637 = vmatprep.subr.bf16.mxu0 0
        %1638 = vmatpush1.bf16.msra.mxu0 %v1595
        %1639 = vmatprep.subr.bf16.mxu0 0
        %1640 = vmatpush1.bf16.msra.mxu0 %v1596
        %1641 = vmatprep.subr.bf16.mxu0 0
        %1642 = vmatpush1.bf16.msra.mxu0 %v1597
        %1643 = vmatprep.subr.bf16.mxu0 0
        %1644 = vmatpush1.bf16.msra.mxu0 %v1598
        %1645 = vmatprep.subr.bf16.mxu0 0
        %1646 = vmatpush1.bf16.msra.mxu0 %v1599
        %1647 = vmatprep.subr.bf16.mxu0 0
        %1648 = vmatpush1.bf16.msra.mxu0 %v1600
        %1649 = vmatprep.mubr.bf16.mxu0 %v1514
        %1650 = vmatmul.mubr.bf16.gmra.mrb[0].mxu0 %v1513
        %v1651 = vpop.f32.mrb[0].mxu0
        %v1652 = vadd.f32 %v1502, %v1651
        %v1653 = vpop.f32.mrb[0].mxu0
        %v1654 = vpop.f32.mrb[0].mxu0
        %v1655 = vadd.f32 %v1502, %v1654
        %v1656 = vpop.f32.mrb[0].mxu0
        %1657 = vmatprep.mubr.bf16.mxu0 %v1516
        %1658 = vmatmul.mubr.bf16.gmra.mrb[0].mxu0 %v1515
        %v1659 = vpop.f32.mrb[0].mxu0
        %v1660 = vadd.f32 %v1502, %v1659
        %v1661 = vpop.f32.mrb[0].mxu0
        %v1662 = vpop.f32.mrb[0].mxu0
        %v1663 = vpop.f32.mrb[0].mxu0
        %1664 = vdwg.mxu0
        %v1665 = vmax.f32 %v1652, 0.0
        %v1666 = vmax.f32 %v1655, 0.0
        %v1667 = vmax.f32 %v1660, 0.0
        %v1668 = vpack.c.bf16 %v1666, %v1665
        %v1669 = vpack.c.bf16 %v1667, %v1667
        %s1670 = scalar_lea.vmem %s378, 192 [#allocation9]
        %v1671 = vld [vmem:[%s1670] sm:$0xf]
        %v1672 = vld [vmem:[%s1670 + $0x4] sm:$0xf]
        %v1673 = vld [vmem:[%s1670 + $0x8] sm:$0xf]
        %v1674 = vld [vmem:[%s1670 + $0xc] sm:$0xf]
        %v1675 = vld [vmem:[%s1670 + $0x10] sm:$0xf]
        %v1676 = vld [vmem:[%s1670 + $0x14] sm:$0xf]
        %v1677 = vld [vmem:[%s1670 + $0x18] sm:$0xf]
        %v1678 = vld [vmem:[%s1670 + $0x1c] sm:$0xf]
        %v1679 = vld [vmem:[%s1670 + $0x20] sm:$0xf]
        %v1680 = vld [vmem:[%s1670 + $0x24] sm:$0xf]
        %v1681 = vld [vmem:[%s1670 + $0x28] sm:$0xf]
        %v1682 = vld [vmem:[%s1670 + $0x2c] sm:$0xf]
        %v1683 = vld [vmem:[%s1670 + $0x30] sm:$0xf]
        %v1684 = vld [vmem:[%s1670 + $0x34] sm:$0xf]
        %v1685 = vld [vmem:[%s1670 + $0x38] sm:$0xf]
        %v1686 = vld [vmem:[%s1670 + $0x3c] sm:$0xf]
        %s1687 = scalar_lea.vmem %s387, 3 [#allocation11]
        %v1688 = vld [vmem:[%s1687] sm:$0x1]
        %v1690 = vlaneseq
        %v1691 = vshrl.u32 %v1690, 7
        %v1692 = vsub.s32 0, %v1691
        %v1693 = vrot.slane %v1688, %v1692
        %v1711 = vunpack.c.l.b16 %v1671
        %v1712 = vunpack.c.l.b16 %v1672
        %v1713 = vunpack.c.l.b16 %v1673
        %v1714 = vunpack.c.l.b16 %v1674
        %v1715 = vunpack.c.l.b16 %v1675
        %v1716 = vunpack.c.l.b16 %v1676
        %v1717 = vunpack.c.l.b16 %v1677
        %v1718 = vunpack.c.l.b16 %v1678
        %v1719 = vunpack.c.l.b16 %v1679
        %v1720 = vunpack.c.l.b16 %v1680
        %v1721 = vunpack.c.l.b16 %v1681
        %v1722 = vunpack.c.l.b16 %v1682
        %v1723 = vunpack.c.l.b16 %v1683
        %v1724 = vunpack.c.l.b16 %v1684
        %v1725 = vunpack.c.l.b16 %v1685
        %v1726 = vunpack.c.l.b16 %v1686
        %v1727 = vpack.c.b16 %v1712, %v1711
        %v1728 = vpack.c.b16 %v1714, %v1713
        %v1729 = vpack.c.b16 %v1716, %v1715
        %v1730 = vpack.c.b16 %v1718, %v1717
        %v1731 = vpack.c.b16 %v1720, %v1719
        %v1732 = vpack.c.b16 %v1722, %v1721
        %v1733 = vpack.c.b16 %v1724, %v1723
        %v1734 = vpack.c.b16 %v1726, %v1725
        %1743 = vmatprep.subr.bf16.mxu0 0
        %1744 = vmatpush1.bf16.msra.mxu0 %v1727
        %1745 = vmatprep.subr.bf16.mxu0 0
        %1746 = vmatpush1.bf16.msra.mxu0 %v1728
        %1747 = vmatprep.subr.bf16.mxu0 0
        %1748 = vmatpush1.bf16.msra.mxu0 %v1729
        %1749 = vmatprep.subr.bf16.mxu0 0
        %1750 = vmatpush1.bf16.msra.mxu0 %v1730
        %1751 = vmatprep.subr.bf16.mxu0 0
        %1752 = vmatpush1.bf16.msra.mxu0 %v1731
        %1753 = vmatprep.subr.bf16.mxu0 0
        %1754 = vmatpush1.bf16.msra.mxu0 %v1732
        %1755 = vmatprep.subr.bf16.mxu0 0
        %1756 = vmatpush1.bf16.msra.mxu0 %v1733
        %1757 = vmatprep.subr.bf16.mxu0 0
        %1758 = vmatpush1.bf16.msra.mxu0 %v1734
        %1759 = vmatprep.subr.bf16.mxu0 0
        %1760 = vmatpush1.bf16.msra.mxu0 0
        %1761 = vmatprep.subr.bf16.mxu0 0
        %1762 = vmatpush1.bf16.msra.mxu0 0
        %1763 = vmatprep.subr.bf16.mxu0 0
        %1764 = vmatpush1.bf16.msra.mxu0 0
        %1765 = vmatprep.subr.bf16.mxu0 0
        %1766 = vmatpush1.bf16.msra.mxu0 0
        %1767 = vmatprep.subr.bf16.mxu0 0
        %1768 = vmatpush1.bf16.msra.mxu0 0
        %1769 = vmatprep.subr.bf16.mxu0 0
        %1770 = vmatpush1.bf16.msra.mxu0 0
        %1771 = vmatprep.subr.bf16.mxu0 0
        %1772 = vmatpush1.bf16.msra.mxu0 0
        %1773 = vmatprep.subr.bf16.mxu0 0
        %1774 = vmatpush1.bf16.msra.mxu0 0
        %1775 = vmatprep.mubr.bf16.mxu0 0
        %1776 = vmatmul.mubr.bf16.gmra.mrb[0].mxu0 %v1668
        %v1777 = vpop.f32.mrb[0].mxu0
        %v1778 = vadd.f32 %v1693, %v1777
        %v1779 = vpop.f32.mrb[0].mxu0
        %v1780 = vpop.f32.mrb[0].mxu0
        %v1781 = vadd.f32 %v1693, %v1780
        %v1782 = vpop.f32.mrb[0].mxu0
        %1783 = vmatprep.mubr.bf16.mxu0 0
        %1784 = vmatmul.mubr.bf16.gmra.mrb[0].mxu0 %v1669
        %v1785 = vpop.f32.mrb[0].mxu0
        %v1786 = vadd.f32 %v1693, %v1785
        %v1787 = vpop.f32.mrb[0].mxu0
        %v1788 = vpop.f32.mrb[0].mxu0
        %v1789 = vpop.f32.mrb[0].mxu0
        %1790 = vdwg.mxu0
        %v1791 = vmax.f32 %v1778, 0.0
        %v1792 = vmax.f32 %v1781, 0.0
        %v1793 = vmax.f32 %v1786, 0.0
        %1794 = vst [vmem:[#allocation2 + $0x48] sm:$0xff] %v1791
        %1795 = vst [vmem:[#allocation2 + $0x50] sm:$0xff] %v1792
        %1796 = vst [vmem:[#allocation2 + $0x58] sm:$0xff] %v1793
        %v1797 = vld [vmem:[%s448] sm:$0xff]
        %v1798 = vld [vmem:[#allocation2] sm:$0xff]
        %v1799 = vld [vmem:[#allocation2 + $0x8] sm:$0xff]
        %v1800 = vld [vmem:[#allocation2 + $0x10] sm:$0xff]
        %v1801 = vld [vmem:[#allocation2 + $0x18] sm:$0xff]
        %v1802 = vld [vmem:[#allocation2 + $0x20] sm:$0xff]
        %v1803 = vld [vmem:[#allocation2 + $0x28] sm:$0xff]
        %v1804 = vld [vmem:[#allocation2 + $0x30] sm:$0xff]
        %v1805 = vld [vmem:[#allocation2 + $0x38] sm:$0xff]
        %v1806 = vld [vmem:[#allocation2 + $0x40] sm:$0xff]
        %v1807 = vld [vmem:[#allocation2 + $0x48] sm:$0xff]
        %v1808 = vld [vmem:[#allocation2 + $0x50] sm:$0xff]
        %v1809 = vld [vmem:[#allocation2 + $0x58] sm:$0xff]
        %vm1810 = vcmask 785408
        %v1812 = vsel %vm1810, %v1797, 0
        %1814 = vmatprep.subr.mxu0 0.0
        %1815 = vmatpush1.msra.mxu0 %v1798
        %1816 = vmatprep.subr.mxu0 0.0
        %1817 = vmatpush1.msra.mxu0 %v1799
        %1818 = vmatprep.subr.mxu0 0.0
        %1819 = vmatpush1.msra.mxu0 %v1800
        %1820 = vmatprep.subr.mxu0 0.0
        %1821 = vmatpush1.msra.mxu0 %v1801
        %1822 = vmatprep.subr.mxu0 0.0
        %1823 = vmatpush1.msra.mxu0 %v1802
        %1824 = vmatprep.subr.mxu0 0.0
        %1825 = vmatpush1.msra.mxu0 %v1803
        %1826 = vmatprep.subr.mxu0 0.0
        %1827 = vmatpush1.msra.mxu0 %v1804
        %1828 = vmatprep.subr.mxu0 0.0
        %1829 = vmatpush1.msra.mxu0 %v1805
        %1830 = vmatprep.subr.mxu0 0.0
        %1831 = vmatpush1.msra.mxu0 %v1806
        %1832 = vmatprep.subr.mxu0 0.0
        %1833 = vmatpush1.msra.mxu0 %v1807
        %1834 = vmatprep.subr.mxu0 0.0
        %1835 = vmatpush1.msra.mxu0 %v1808
        %1836 = vmatprep.subr.mxu0 0.0
        %1837 = vmatpush1.msra.mxu0 %v1809
        %1838 = vmatprep.subr.mxu0 0.0
        %1839 = vmatpush1.msra.mxu0 0.0
        %1840 = vmatprep.subr.mxu0 0.0
        %1841 = vmatpush1.msra.mxu0 0.0
        %1842 = vmatprep.subr.mxu0 0.0
        %1843 = vmatpush1.msra.mxu0 0.0
        %1844 = vmatprep.subr.mxu0 0.0
        %1845 = vmatpush1.msra.mxu0 0.0
        %1846 = vmatprep.subr.mxu0 0.0
        %1847 = vmatpush1.msra.mxu0 0.0
        %1848 = vmatprep.subr.mxu0 0.0
        %1849 = vmatpush1.msra.mxu0 0.0
        %1850 = vmatprep.subr.mxu0 0.0
        %1851 = vmatpush1.msra.mxu0 0.0
        %1852 = vmatprep.subr.mxu0 0.0
        %1853 = vmatpush1.msra.mxu0 0.0
        %1854 = vmatprep.subr.mxu0 0.0
        %1855 = vmatpush1.msra.mxu0 0.0
        %1856 = vmatprep.subr.mxu0 0.0
        %1857 = vmatpush1.msra.mxu0 0.0
        %1858 = vmatprep.subr.mxu0 0.0
        %1859 = vmatpush1.msra.mxu0 0.0
        %1860 = vmatprep.subr.mxu0 0.0
        %1861 = vmatpush1.msra.mxu0 0.0
        %1862 = vmatprep.subr.mxu0 0.0
        %1863 = vmatpush1.msra.mxu0 0.0
        %1864 = vmatprep.subr.mxu0 0.0
        %1865 = vmatpush1.msra.mxu0 0.0
        %1866 = vmatprep.subr.mxu0 0.0
        %1867 = vmatpush1.msra.mxu0 0.0
        %1868 = vmatprep.subr.mxu0 0.0
        %1869 = vmatpush1.msra.mxu0 0.0
        %1870 = vmatprep.subr.mxu0 0.0
        %1871 = vmatpush1.msra.mxu0 0.0
        %1872 = vmatprep.subr.mxu0 0.0
        %1873 = vmatpush1.msra.mxu0 0.0
        %1874 = vmatprep.subr.mxu0 0.0
        %1875 = vmatpush1.msra.mxu0 0.0
        %1876 = vmatprep.subr.mxu0 0.0
        %1877 = vmatpush1.msra.mxu0 0.0
        %1878 = vmatprep.mubr.f32.mxu0 0.0
        %1879 = vmatmul.mubr.f32.gmra.mrb[0].mxu0 %v1812
        %v1880 = vpop.f32.mrb[0].mxu0
        %v1881 = vadd.f32 0.0, %v1880
        %v1882 = vpop.f32.mrb[0].mxu0
        %1883 = vdwg.mxu0
        %1884 = vst [vmem:[%s439] sm:$0xff] %v1881
        %s1885 = sand.u32 %s193, 1
        %s1886 = scalar_lea.sflag [#allocation5], %s1885
        %s1887 = sand.u32 %s193, 1
        %s1888 = smul.addr %s1887, 8
        %s1889 = scalar_lea.vmem [#allocation12], %s1888
        // Predicated region
        $region65: #{tpu_custom_call.1} parent=43 // pred_check
          %p1890 = pneg %p203
        $region66: #{tpu_custom_call.1} parent=43 // pred_check_branch
          %1892 = sbr.rel (%p1890) target = $region68
        $region67: #{tpu_custom_call.1} parent=43 // pred_region
          %s1894 = ssub.s32 128, 128
          %1895 = vsyncadd %s1886, %s1894
          %s1896 = smul.addr %s29, 128
          %s1897 = scalar_lea.hbm %s6, %s1896
          %s1899 = sshll.u32 %s1889, 4
          %s1900 = int_to_ptr.vmem [resolvable:$true] %s1899
          %1902 = dma.vmem_to_hbm [thread:$0]  %s1900, 128, %s1897, %s1886
        $region68: #{tpu_custom_call.1} parent=43 // pred_fallthru
          _
      $region44: #{tpu_custom_call.1} parent=5 // pred_fallthru
        _
      %p1903 = scmp.le.s32.totalorder 2, %s24
      // Predicated region
      $region69: #{tpu_custom_call.1} parent=5 // pred_check
        %p1904 = pneg %p1903
      $region70: #{tpu_custom_call.1} parent=5 // pred_check_branch
        %1906 = sbr.rel (%p1904) target = $region72
      $region71: #{tpu_custom_call.1} parent=5 // pred_region
        %s1907 = ssub.s32 %s24, 2
        // Predicated region
        $region73: #{tpu_custom_call.1} parent=71 // pred_check
          %p1908 = pneg %p209
        $region74: #{tpu_custom_call.1} parent=71 // pred_check_branch
          %1910 = sbr.rel (%p1908) target = $region76
        $region75: #{tpu_custom_call.1} parent=71 // pred_region
          %s1911 = sand.u32 %s194, 1
          %s1912 = scalar_lea.sflag [#allocation5], %s1911
          %s1913 = sand.u32 %s194, 1
          %s1914 = smul.addr %s1913, 8
          %s1915 = scalar_lea.vmem [#allocation12], %s1914
          %1916 = dma.done %s1912, 128
        $region76: #{tpu_custom_call.1} parent=71 // pred_fallthru
          _
      $region72: #{tpu_custom_call.1} parent=5 // pred_fallthru
        _
    $region6: #{tpu_custom_call.1} parent=1 // loop_footer
      %s28 = sadd.s32 1, %s24
    $region7: #{tpu_custom_call.1} parent=1 // loop_footer_branch
      %23 = sbr.rel target = $region3
    $region8: #{tpu_custom_call.1} parent=1 // loop_exit
      _
    %1917 = vsyncpa [#allocation4], 1
    %s1918 = scalar_lea.sflag [#allocation4], 1
    %1919 = vsyncpa %s1918, 1
    %1920 = vsyncpa [#allocation7], 1
    %s1921 = scalar_lea.sflag [#allocation7], 1
    %1922 = vsyncpa %s1921, 1
    %1923 = vsyncpa [#allocation10], 1
    %s1924 = scalar_lea.sflag [#allocation10], 1
    %1925 = vsyncpa %s1924, 1
    %1926 = vsyncpa [#allocation5], 1
    %s1927 = scalar_lea.sflag [#allocation5], 1
    %1928 = vsyncpa %s1927, 1

</llo_original>
